<compile_context>
chip_gen: v5e
topology: v5e:2x2
jax: 0.10.0
libtpu: 0.0.40
codegen_flags: <defaults>
</compile_context>

<pallas_src>
import functools

import jax
import jax.numpy as jnp
from jax.experimental import pallas as pl
from jax.experimental.pallas import tpu as pltpu


def _round_up(x, m):
    return ((x + m - 1) // m) * m


def _choose_batch_tile(batch, seq, target_rows, max_tb=8, min_grid=2):
    """Pick a batch tile TB (a divisor of `batch`) with TB*seq ~ target_rows.

    Capped at `max_tb` (keeps the unrolled in-kernel loop short) and kept small
    enough that the grid has at least `min_grid` steps whenever the batch
    allows it, so both of v7x's TensorCores get work under "parallel" sharding.
    """
    tb = max(1, min(batch, max_tb, target_rows // max(seq, 1)))
    while batch % tb:
        tb -= 1
    while tb > 1 and batch // tb < min_grid:
        tb -= 1
        while batch % tb:
            tb -= 1
    return tb


def pos_emb_kernel(x_ref, w_ref, b_ref, cls_ref, o_ref, *, compute_dtype,
                   fuse_cls):
    # x_ref:   (TB, P, IN)       activations at native dtype (cast in VMEM)
    # w_ref:   (IN, Hp)          linear weight in compute dtype, lane-padded
    # b_ref:   (1, Hp)           linear bias (f32)
    # cls_ref: (1, Hp)           CLS token (f32); unused when fuse_cls=False
    # o_ref:   (TB, P+1, Hp) fused  /  (TB, P, Hp) unfused, f32
    tb, p = x_ref.shape[0], x_ref.shape[1]
    w = w_ref[...]
    b = b_ref[...]                                               # (1, Hp)
    # Patch rows sit at sequence positions 1..P (CLS is position 0 -> adds 0).
    pos = (jax.lax.broadcasted_iota(jnp.int32, (p, 1), 0) + 1).astype(jnp.float32)
    if fuse_cls:
        cls_row = cls_ref[...].astype(o_ref.dtype)               # (1, Hp)
    for bi in range(tb):                                         # static, <= 8
        xb = x_ref[bi].astype(compute_dtype)                     # in-VMEM cast (VPU slack)
        yb = jnp.dot(xb, w, preferred_element_type=jnp.float32)  # MXU, f32 acc
        yb = (yb + b + pos).astype(o_ref.dtype)                  # bias + position (f32)
        if fuse_cls:
            o_ref[bi, 0:1, :] = cls_row                          # sequence position 0
            o_ref[bi, 1:, :] = yb                                # positions 1..P
        else:
            o_ref[bi] = yb


def position_embedding(inputs, w, b, cls_tok, *,
                       compute_dtype=jnp.bfloat16, target_rows=None):
    """ViT PositionEmbedding forward.

    inputs: (B, P, IN) patch features; w: (IN, H) = PyTorch `lin.weight.T`;
    b: (H,) bias; cls_tok: (1, 1, H).  Returns (B, P+1, H) float32 with
        out[:, 0]     = cls_tok + 0
        out[:, p + 1] = inputs[:, p] @ w + b + (p + 1)
    bf16 compute keeps f32 MXU accumulation; tolerance vs an f32 reference is
    necessarily looser (~1e-2 relative) than the f32 compute path.
    """
    B, P, IN = inputs.shape
    H = w.shape[1]

    LANE = 128
    Hp = _round_up(H, LANE)       # lane-dense output; Hp == H for real ViT dims

    if target_rows is None:
        # HBM-bound: aim for ~512 (f32) / ~1024 (bf16) matmul rows per step.
        target_rows = 1024 if jnp.dtype(compute_dtype).itemsize <= 2 else 512
    TB = _choose_batch_tile(B, P, target_rows)

    # Grid-invariant small operands: cast / lane-pad once in the wrapper.
    w_p = w.astype(compute_dtype)
    b_p = b.astype(jnp.float32)
    cls_p = cls_tok.reshape(1, H).astype(jnp.float32)
    if Hp != H:
        w_p = jnp.pad(w_p, ((0, 0), (0, Hp - H)))
        b_p = jnp.pad(b_p, (0, Hp - H))
        cls_p = jnp.pad(cls_p, ((0, 0), (0, Hp - H)))
    b_p = b_p.reshape(1, Hp)

    x_item = jnp.dtype(inputs.dtype).itemsize
    c_item = jnp.dtype(compute_dtype).itemsize
    cost = pl.CostEstimate(
        flops=2 * B * P * IN * Hp,
        transcendentals=0,
        bytes_accessed=(B * P * IN * x_item + IN * Hp * c_item
                        + B * (P + 1) * Hp * 4),
    )
    # Explicit VMEM budget: v5e's scoped default is only 16 MiB, v7x physical
    # VMEM is 64 MiB -- size it from the actual tiles with 2x headroom.
    vmem_need = (2 * TB * P * IN * x_item          # x tiles (double-buffered)
                 + 2 * TB * (P + 1) * Hp * 4       # out tiles (double-buffered)
                 + 2 * IN * Hp * c_item            # weight (<= 2 buffers)
                 + 4 * Hp * 4)                     # bias + CLS token
    vmem_limit = int(min(max(2 * vmem_need, 32 << 20), 64 << 20))

    grid = (B // TB,)

    def _call(fuse_cls, single_buffer_invariants):
        if single_buffer_invariants:
            # Grid-invariant blocks: single buffer (their block index never
            # changes, so double-buffering only doubles their VMEM footprint).
            inv = lambda shp: pl.BlockSpec(shp, lambda i: (0,) * len(shp),
                                           pipeline_mode=pl.Buffered(1))
        else:
            inv = lambda shp: pl.BlockSpec(shp, lambda i: (0,) * len(shp))
        rows_out = P + 1 if fuse_cls else P
        kernel = functools.partial(pos_emb_kernel, compute_dtype=compute_dtype,
                                   fuse_cls=fuse_cls)
        return pl.pallas_call(
            kernel,
            out_shape=jax.ShapeDtypeStruct((B, rows_out, Hp), jnp.float32),
            grid_spec=pltpu.PrefetchScalarGridSpec(
                num_scalar_prefetch=0,
                grid=grid,
                in_specs=[
                    pl.BlockSpec((TB, P, IN), lambda i: (i, 0, 0)),
                    inv((IN, Hp)),
                    inv((1, Hp)),
                    inv((1, Hp)),
                ],
                out_specs=pl.BlockSpec((TB, rows_out, Hp), lambda i: (i, 0, 0)),
            ),
            compiler_params=pltpu.CompilerParams(
                dimension_semantics=("parallel",),
                vmem_limit_bytes=vmem_limit),
            cost_estimate=cost,
        )(inputs, w_p, b_p, cls_p)

    # Preferred config first; degrade gracefully if the running JAX/Mosaic
    # build rejects single-buffering (pl.Buffered(1)) or the in-kernel CLS
    # fusion, so the op always runs.
    last_err = None
    for fuse_cls, single_buf in ((True, True), (True, False),
                                 (False, True), (False, False)):
        try:
            y = _call(fuse_cls, single_buf)
            break
        except Exception as err:                      # noqa: BLE001
            last_err = err
    else:
        raise last_err

    if not fuse_cls:
        # Fallback epilogue only: prepend the CLS row (position 0 adds 0).
        cls_rep = jnp.broadcast_to(cls_p[None], (B, 1, Hp))
        y = jnp.concatenate([cls_rep, y], axis=1)

    if Hp != H:
        y = y[..., :H]            # drop lane padding (no-op when H % 128 == 0)
    # TODO(synk): optionally emit bf16 output once downstream consumers accept
    # it (halves the output writeback for this HBM-bound op).
    return y


if __name__ == "__main__":
    # Small shapes consistent with the module: num_patches=4, hid_dim=32
    # (the nn.Linear input dim is hard-coded to 768 in the PyTorch module).
    B, P, IN, H = 2, 4, 768, 32

    key = jax.random.PRNGKey(0)
    k_x, k_w, k_b, k_cls = jax.random.split(key, 4)
    x = jax.random.normal(k_x, (B, P, IN), dtype=jnp.float32)
    w = jax.random.normal(k_w, (IN, H), dtype=jnp.float32) * 0.02
    b = jax.random.normal(k_b, (H,), dtype=jnp.float32) * 0.02
    cls_tok = jax.random.normal(k_cls, (1, 1, H), dtype=jnp.float32)

    # Pure-JAX reference mirroring the PyTorch forward (w == lin.weight.T).
    lin = jnp.einsum("bpi,ih->bph", x, w) + b
    ref = jnp.concatenate([jnp.broadcast_to(cls_tok, (B, 1, H)), lin], axis=1)
    ref = ref + jnp.arange(P + 1, dtype=jnp.float32)[None, :, None]

    # Default path: bf16 compute on the MXU (f32 accumulation) -> loose check.
    out = jax.block_until_ready(position_embedding(x, w, b, cls_tok))
    assert out.shape == (B, P + 1, H)
    assert jnp.allclose(out, ref, atol=5e-2, rtol=5e-2)

    # f32 compute path -> tight check against the f32 reference.
    out_f32 = jax.block_until_ready(
        position_embedding(x, w, b, cls_tok, compute_dtype=jnp.float32))
    assert out_f32.shape == (B, P + 1, H)
    assert jnp.allclose(out_f32, ref, atol=1e-4, rtol=1e-4)

    print("KERNEL_OK")
</pallas_src>

<mosaic_0001>
module attributes {stable_mosaic.version = 11 : i64} {
  func.func @pos_emb_kernel(%arg0: i32, %arg1: memref<1x4x768xf32, #tpu.memory_space<vmem>>, %arg2: memref<768x128xbf16, #tpu.memory_space<vmem>>, %arg3: memref<1x128xf32, #tpu.memory_space<vmem>>, %arg4: memref<1x128xf32, #tpu.memory_space<vmem>>, %arg5: memref<1x5x128xf32, #tpu.memory_space<vmem>>) attributes {dimension_semantics = [#tpu.dimension_semantics<parallel>], iteration_bounds = array<i64: 2>, scalar_prefetch = 0 : i64, scratch_operands = 0 : i64, tpu.core_type = #tpu.core_type<tc>, window_params = [{transform_indices = @transform_0, window_bounds = array<i64: 1, 4, 768>}, {pipeline_mode = #tpu.pipeline_mode<synchronous>, transform_indices = @transform_1, window_bounds = array<i64: 768, 128>}, {pipeline_mode = #tpu.pipeline_mode<synchronous>, transform_indices = @transform_2, window_bounds = array<i64: 1, 128>}, {pipeline_mode = #tpu.pipeline_mode<synchronous>, transform_indices = @transform_3, window_bounds = array<i64: 1, 128>}, {transform_indices = @transform_4, window_bounds = array<i64: 1, 5, 128>}]} {
    %c0 = arith.constant 0 : index
    %c0_0 = arith.constant 0 : index
    %0 = vector.load %arg2[%c0, %c0_0] : memref<768x128xbf16, #tpu.memory_space<vmem>>, vector<768x128xbf16>
    %c0_1 = arith.constant 0 : index
    %c0_2 = arith.constant 0 : index
    %1 = vector.load %arg3[%c0_1, %c0_2] : memref<1x128xf32, #tpu.memory_space<vmem>>, vector<1x128xf32>
    %2 = tpu.iota {dimensions = array<i32: 0>} : vector<4x1xi32>
    %c1_i32 = arith.constant 1 : i32
    %3 = vector.broadcast %c1_i32 : i32 to vector<4x1xi32>
    %4 = arith.addi %2, %3 : vector<4x1xi32>
    %5 = arith.sitofp %4 : vector<4x1xi32> to vector<4x1xf32>
    %c0_3 = arith.constant 0 : index
    %c0_4 = arith.constant 0 : index
    %6 = vector.load %arg4[%c0_3, %c0_4] : memref<1x128xf32, #tpu.memory_space<vmem>>, vector<1x128xf32>
    %c0_5 = arith.constant 0 : index
    %c0_6 = arith.constant 0 : index
    %c0_7 = arith.constant 0 : index
    %7 = vector.load %arg1[%c0_5, %c0_6, %c0_7] : memref<1x4x768xf32, #tpu.memory_space<vmem>>, vector<1x4x768xf32>
    %8 = vector.shape_cast %7 : vector<1x4x768xf32> to vector<4x768xf32>
    %9 = arith.truncf %8 : vector<4x768xf32> to vector<4x768xbf16>
    %cst = arith.constant dense<0.000000e+00> : vector<4x128xf32>
    %10 = tpu.matmul %9, %0, %cst {dimension_numbers = #tpu.dot_dimension_numbers<[1], [0], [0], [1], [0, 0, 1, 1], [], []>} : vector<4x768xbf16>, vector<768x128xbf16>, vector<4x128xf32> -> vector<4x128xf32>
    %11 = vector.broadcast %1 : vector<1x128xf32> to vector<4x128xf32>
    %12 = arith.addf %10, %11 : vector<4x128xf32>
    %13 = vector.broadcast %5 : vector<4x1xf32> to vector<4x128xf32>
    %14 = arith.addf %12, %13 : vector<4x128xf32>
    %c0_8 = arith.constant 0 : index
    %c0_9 = arith.constant 0 : index
    %c0_10 = arith.constant 0 : index
    %15 = vector.load %arg5[%c0_8, %c0_9, %c0_10] : memref<1x5x128xf32, #tpu.memory_space<vmem>>, vector<1x1x128xf32>
    %16 = vector.shape_cast %15 : vector<1x1x128xf32> to vector<1x128xf32>
    %17 = vector.shape_cast %6 : vector<1x128xf32> to vector<1x1x128xf32>
    tpu.vector_store %arg5[%c0_8, %c0_9, %c0_10], %17 {strides = array<i32>} : memref<1x5x128xf32, #tpu.memory_space<vmem>>, vector<1x1x128xf32>,
    %c0_11 = arith.constant 0 : index
    %c1 = arith.constant 1 : index
    %c0_12 = arith.constant 0 : index
    %18 = vector.load %arg5[%c0_11, %c1, %c0_12] : memref<1x5x128xf32, #tpu.memory_space<vmem>>, vector<1x4x128xf32>
    %19 = vector.shape_cast %18 : vector<1x4x128xf32> to vector<4x128xf32>
    %20 = vector.shape_cast %14 : vector<4x128xf32> to vector<1x4x128xf32>
    tpu.vector_store %arg5[%c0_11, %c1, %c0_12], %20 {strides = array<i32>} : memref<1x5x128xf32, #tpu.memory_space<vmem>>, vector<1x4x128xf32>,
    return
  }
  func.func @transform_0(%arg0: i32) -> (i32, i32, i32) {
    %c0_i32 = arith.constant 0 : i32
    %c0_i32_0 = arith.constant 0 : i32
    %c0_i32_1 = arith.constant 0 : i32
    return %arg0, %c0_i32, %c0_i32_0 : i32, i32, i32
  }
  func.func @transform_1(%arg0: i32) -> (i32, i32) {
    %c0_i32 = arith.constant 0 : i32
    %c0_i32_0 = arith.constant 0 : i32
    %c0_i32_1 = arith.constant 0 : i32
    return %c0_i32, %c0_i32_0 : i32, i32
  }
  func.func @transform_2(%arg0: i32) -> (i32, i32) {
    %c0_i32 = arith.constant 0 : i32
    %c0_i32_0 = arith.constant 0 : i32
    %c0_i32_1 = arith.constant 0 : i32
    return %c0_i32, %c0_i32_0 : i32, i32
  }
  func.func @transform_3(%arg0: i32) -> (i32, i32) {
    %c0_i32 = arith.constant 0 : i32
    %c0_i32_0 = arith.constant 0 : i32
    %c0_i32_1 = arith.constant 0 : i32
    return %c0_i32, %c0_i32_0 : i32, i32
  }
  func.func @transform_4(%arg0: i32) -> (i32, i32, i32) {
    %c0_i32 = arith.constant 0 : i32
    %c0_i32_0 = arith.constant 0 : i32
    %c0_i32_1 = arith.constant 0 : i32
    return %arg0, %c0_i32, %c0_i32_0 : i32, i32, i32
  }
}

module attributes {stable_mosaic.version = 11 : i64} {
  func.func @pos_emb_kernel(%arg0: i32, %arg1: memref<1x4x768xf32, #tpu.memory_space<vmem>>, %arg2: memref<768x128xbf16, #tpu.memory_space<vmem>>, %arg3: memref<1x128xf32, #tpu.memory_space<vmem>>, %arg4: memref<1x128xf32, #tpu.memory_space<vmem>>, %arg5: memref<1x5x128xf32, #tpu.memory_space<vmem>>) attributes {dimension_semantics = [#tpu.dimension_semantics<parallel>], iteration_bounds = array<i64: 2>, scalar_prefetch = 0 : i64, scratch_operands = 0 : i64, tpu.core_type = #tpu.core_type<tc>, window_params = [{transform_indices = @transform_0, window_bounds = array<i64: 1, 4, 768>}, {pipeline_mode = #tpu.pipeline_mode<synchronous>, transform_indices = @transform_1, window_bounds = array<i64: 768, 128>}, {pipeline_mode = #tpu.pipeline_mode<synchronous>, transform_indices = @transform_2, window_bounds = array<i64: 1, 128>}, {pipeline_mode = #tpu.pipeline_mode<synchronous>, transform_indices = @transform_3, window_bounds = array<i64: 1, 128>}, {transform_indices = @transform_4, window_bounds = array<i64: 1, 5, 128>}]} {
    %c0 = arith.constant 0 : index
    %c0_0 = arith.constant 0 : index
    %0 = vector.load %arg2[%c0, %c0_0] : memref<768x128xbf16, #tpu.memory_space<vmem>>, vector<768x128xbf16>
    %c0_1 = arith.constant 0 : index
    %c0_2 = arith.constant 0 : index
    %1 = vector.load %arg3[%c0_1, %c0_2] : memref<1x128xf32, #tpu.memory_space<vmem>>, vector<1x128xf32>
    %2 = tpu.iota {dimensions = array<i32: 0>} : vector<4x1xi32>
    %c1_i32 = arith.constant 1 : i32
    %3 = vector.broadcast %c1_i32 : i32 to vector<4x1xi32>
    %4 = arith.addi %2, %3 : vector<4x1xi32>
    %5 = arith.sitofp %4 : vector<4x1xi32> to vector<4x1xf32>
    %c0_3 = arith.constant 0 : index
    %c0_4 = arith.constant 0 : index
    %6 = vector.load %arg4[%c0_3, %c0_4] : memref<1x128xf32, #tpu.memory_space<vmem>>, vector<1x128xf32>
    %c0_5 = arith.constant 0 : index
    %c0_6 = arith.constant 0 : index
    %c0_7 = arith.constant 0 : index
    %7 = vector.load %arg1[%c0_5, %c0_6, %c0_7] : memref<1x4x768xf32, #tpu.memory_space<vmem>>, vector<1x4x768xf32>
    %8 = vector.shape_cast %7 : vector<1x4x768xf32> to vector<4x768xf32>
    %9 = arith.truncf %8 : vector<4x768xf32> to vector<4x768xbf16>
    %cst = arith.constant dense<0.000000e+00> : vector<4x128xf32>
    %10 = tpu.matmul %9, %0, %cst {dimension_numbers = #tpu.dot_dimension_numbers<[1], [0], [0], [1], [0, 0, 1, 1], [], []>} : vector<4x768xbf16>, vector<768x128xbf16>, vector<4x128xf32> -> vector<4x128xf32>
    %11 = vector.broadcast %1 : vector<1x128xf32> to vector<4x128xf32>
    %12 = arith.addf %10, %11 : vector<4x128xf32>
    %13 = vector.broadcast %5 : vector<4x1xf32> to vector<4x128xf32>
    %14 = arith.addf %12, %13 : vector<4x128xf32>
    %c0_8 = arith.constant 0 : index
    %c0_9 = arith.constant 0 : index
    %c0_10 = arith.constant 0 : index
    %15 = vector.load %arg5[%c0_8, %c0_9, %c0_10] : memref<1x5x128xf32, #tpu.memory_space<vmem>>, vector<1x1x128xf32>
    %16 = vector.shape_cast %15 : vector<1x1x128xf32> to vector<1x128xf32>
    %17 = vector.shape_cast %6 : vector<1x128xf32> to vector<1x1x128xf32>
    tpu.vector_store %arg5[%c0_8, %c0_9, %c0_10], %17 {strides = array<i32>} : memref<1x5x128xf32, #tpu.memory_space<vmem>>, vector<1x1x128xf32>,
    %c0_11 = arith.constant 0 : index
    %c1 = arith.constant 1 : index
    %c0_12 = arith.constant 0 : index
    %18 = vector.load %arg5[%c0_11, %c1, %c0_12] : memref<1x5x128xf32, #tpu.memory_space<vmem>>, vector<1x4x128xf32>
    %19 = vector.shape_cast %18 : vector<1x4x128xf32> to vector<4x128xf32>
    %20 = vector.shape_cast %14 : vector<4x128xf32> to vector<1x4x128xf32>
    tpu.vector_store %arg5[%c0_11, %c1, %c0_12], %20 {strides = array<i32>} : memref<1x5x128xf32, #tpu.memory_space<vmem>>, vector<1x4x128xf32>,
    return
  }
  func.func @transform_0(%arg0: i32) -> (i32, i32, i32) {
    %c0_i32 = arith.constant 0 : i32
    %c0_i32_0 = arith.constant 0 : i32
    %c0_i32_1 = arith.constant 0 : i32
    return %arg0, %c0_i32, %c0_i32_0 : i32, i32, i32
  }
  func.func @transform_1(%arg0: i32) -> (i32, i32) {
    %c0_i32 = arith.constant 0 : i32
    %c0_i32_0 = arith.constant 0 : i32
    %c0_i32_1 = arith.constant 0 : i32
    return %c0_i32, %c0_i32_0 : i32, i32
  }
  func.func @transform_2(%arg0: i32) -> (i32, i32) {
    %c0_i32 = arith.constant 0 : i32
    %c0_i32_0 = arith.constant 0 : i32
    %c0_i32_1 = arith.constant 0 : i32
    return %c0_i32, %c0_i32_0 : i32, i32
  }
  func.func @transform_3(%arg0: i32) -> (i32, i32) {
    %c0_i32 = arith.constant 0 : i32
    %c0_i32_0 = arith.constant 0 : i32
    %c0_i32_1 = arith.constant 0 : i32
    return %c0_i32, %c0_i32_0 : i32, i32
  }
  func.func @transform_4(%arg0: i32) -> (i32, i32, i32) {
    %c0_i32 = arith.constant 0 : i32
    %c0_i32_0 = arith.constant 0 : i32
    %c0_i32_1 = arith.constant 0 : i32
    return %arg0, %c0_i32, %c0_i32_0 : i32, i32, i32
  }
}

module attributes {stable_mosaic.version = 11 : i64} {
  func.func @pos_emb_kernel(%arg0: i32, %arg1: memref<1x4x768xf32, #tpu.memory_space<vmem>>, %arg2: memref<768x128xbf16, #tpu.memory_space<vmem>>, %arg3: memref<1x128xf32, #tpu.memory_space<vmem>>, %arg4: memref<1x128xf32, #tpu.memory_space<vmem>>, %arg5: memref<1x4x128xf32, #tpu.memory_space<vmem>>) attributes {dimension_semantics = [#tpu.dimension_semantics<parallel>], iteration_bounds = array<i64: 2>, scalar_prefetch = 0 : i64, scratch_operands = 0 : i64, tpu.core_type = #tpu.core_type<tc>, window_params = [{transform_indices = @transform_0, window_bounds = array<i64: 1, 4, 768>}, {pipeline_mode = #tpu.pipeline_mode<synchronous>, transform_indices = @transform_1, window_bounds = array<i64: 768, 128>}, {pipeline_mode = #tpu.pipeline_mode<synchronous>, transform_indices = @transform_2, window_bounds = array<i64: 1, 128>}, {pipeline_mode = #tpu.pipeline_mode<synchronous>, transform_indices = @transform_3, window_bounds = array<i64: 1, 128>}, {transform_indices = @transform_4, window_bounds = array<i64: 1, 4, 128>}]} {
    %c0 = arith.constant 0 : index
    %c0_0 = arith.constant 0 : index
    %0 = vector.load %arg2[%c0, %c0_0] : memref<768x128xbf16, #tpu.memory_space<vmem>>, vector<768x128xbf16>
    %c0_1 = arith.constant 0 : index
    %c0_2 = arith.constant 0 : index
    %1 = vector.load %arg3[%c0_1, %c0_2] : memref<1x128xf32, #tpu.memory_space<vmem>>, vector<1x128xf32>
    %2 = tpu.iota {dimensions = array<i32: 0>} : vector<4x1xi32>
    %c1_i32 = arith.constant 1 : i32
    %3 = vector.broadcast %c1_i32 : i32 to vector<4x1xi32>
    %4 = arith.addi %2, %3 : vector<4x1xi32>
    %5 = arith.sitofp %4 : vector<4x1xi32> to vector<4x1xf32>
    %c0_3 = arith.constant 0 : index
    %c0_4 = arith.constant 0 : index
    %c0_5 = arith.constant 0 : index
    %6 = vector.load %arg1[%c0_3, %c0_4, %c0_5] : memref<1x4x768xf32, #tpu.memory_space<vmem>>, vector<1x4x768xf32>
    %7 = vector.shape_cast %6 : vector<1x4x768xf32> to vector<4x768xf32>
    %8 = arith.truncf %7 : vector<4x768xf32> to vector<4x768xbf16>
    %cst = arith.constant dense<0.000000e+00> : vector<4x128xf32>
    %9 = tpu.matmul %8, %0, %cst {dimension_numbers = #tpu.dot_dimension_numbers<[1], [0], [0], [1], [0, 0, 1, 1], [], []>} : vector<4x768xbf16>, vector<768x128xbf16>, vector<4x128xf32> -> vector<4x128xf32>
    %10 = vector.broadcast %1 : vector<1x128xf32> to vector<4x128xf32>
    %11 = arith.addf %9, %10 : vector<4x128xf32>
    %12 = vector.broadcast %5 : vector<4x1xf32> to vector<4x128xf32>
    %13 = arith.addf %11, %12 : vector<4x128xf32>
    %c0_6 = arith.constant 0 : index
    %c0_7 = arith.constant 0 : index
    %c0_8 = arith.constant 0 : index
    %14 = vector.load %arg5[%c0_6, %c0_7, %c0_8] : memref<1x4x128xf32, #tpu.memory_space<vmem>>, vector<1x4x128xf32>
    %15 = vector.shape_cast %14 : vector<1x4x128xf32> to vector<4x128xf32>
    %16 = vector.shape_cast %13 : vector<4x128xf32> to vector<1x4x128xf32>
    tpu.vector_store %arg5[%c0_6, %c0_7, %c0_8], %16 {strides = array<i32>} : memref<1x4x128xf32, #tpu.memory_space<vmem>>, vector<1x4x128xf32>,
    return
  }
  func.func @transform_0(%arg0: i32) -> (i32, i32, i32) {
    %c0_i32 = arith.constant 0 : i32
    %c0_i32_0 = arith.constant 0 : i32
    %c0_i32_1 = arith.constant 0 : i32
    return %arg0, %c0_i32, %c0_i32_0 : i32, i32, i32
  }
  func.func @transform_1(%arg0: i32) -> (i32, i32) {
    %c0_i32 = arith.constant 0 : i32
    %c0_i32_0 = arith.constant 0 : i32
    %c0_i32_1 = arith.constant 0 : i32
    return %c0_i32, %c0_i32_0 : i32, i32
  }
  func.func @transform_2(%arg0: i32) -> (i32, i32) {
    %c0_i32 = arith.constant 0 : i32
    %c0_i32_0 = arith.constant 0 : i32
    %c0_i32_1 = arith.constant 0 : i32
    return %c0_i32, %c0_i32_0 : i32, i32
  }
  func.func @transform_3(%arg0: i32) -> (i32, i32) {
    %c0_i32 = arith.constant 0 : i32
    %c0_i32_0 = arith.constant 0 : i32
    %c0_i32_1 = arith.constant 0 : i32
    return %c0_i32, %c0_i32_0 : i32, i32
  }
  func.func @transform_4(%arg0: i32) -> (i32, i32, i32) {
    %c0_i32 = arith.constant 0 : i32
    %c0_i32_0 = arith.constant 0 : i32
    %c0_i32_1 = arith.constant 0 : i32
    return %arg0, %c0_i32, %c0_i32_0 : i32, i32, i32
  }
}

module attributes {stable_mosaic.version = 11 : i64} {
  func.func @pos_emb_kernel(%arg0: i32, %arg1: memref<1x4x768xf32, #tpu.memory_space<vmem>>, %arg2: memref<768x128xbf16, #tpu.memory_space<vmem>>, %arg3: memref<1x128xf32, #tpu.memory_space<vmem>>, %arg4: memref<1x128xf32, #tpu.memory_space<vmem>>, %arg5: memref<1x4x128xf32, #tpu.memory_space<vmem>>) attributes {dimension_semantics = [#tpu.dimension_semantics<parallel>], iteration_bounds = array<i64: 2>, scalar_prefetch = 0 : i64, scratch_operands = 0 : i64, tpu.core_type = #tpu.core_type<tc>, window_params = [{transform_indices = @transform_0, window_bounds = array<i64: 1, 4, 768>}, {pipeline_mode = #tpu.pipeline_mode<synchronous>, transform_indices = @transform_1, window_bounds = array<i64: 768, 128>}, {pipeline_mode = #tpu.pipeline_mode<synchronous>, transform_indices = @transform_2, window_bounds = array<i64: 1, 128>}, {pipeline_mode = #tpu.pipeline_mode<synchronous>, transform_indices = @transform_3, window_bounds = array<i64: 1, 128>}, {transform_indices = @transform_4, window_bounds = array<i64: 1, 4, 128>}]} {
    %c0 = arith.constant 0 : index
    %c0_0 = arith.constant 0 : index
    %0 = vector.load %arg2[%c0, %c0_0] : memref<768x128xbf16, #tpu.memory_space<vmem>>, vector<768x128xbf16>
    %c0_1 = arith.constant 0 : index
    %c0_2 = arith.constant 0 : index
    %1 = vector.load %arg3[%c0_1, %c0_2] : memref<1x128xf32, #tpu.memory_space<vmem>>, vector<1x128xf32>
    %2 = tpu.iota {dimensions = array<i32: 0>} : vector<4x1xi32>
    %c1_i32 = arith.constant 1 : i32
    %3 = vector.broadcast %c1_i32 : i32 to vector<4x1xi32>
    %4 = arith.addi %2, %3 : vector<4x1xi32>
    %5 = arith.sitofp %4 : vector<4x1xi32> to vector<4x1xf32>
    %c0_3 = arith.constant 0 : index
    %c0_4 = arith.constant 0 : index
    %c0_5 = arith.constant 0 : index
    %6 = vector.load %arg1[%c0_3, %c0_4, %c0_5] : memref<1x4x768xf32, #tpu.memory_space<vmem>>, vector<1x4x768xf32>
    %7 = vector.shape_cast %6 : vector<1x4x768xf32> to vector<4x768xf32>
    %8 = arith.truncf %7 : vector<4x768xf32> to vector<4x768xbf16>
    %cst = arith.constant dense<0.000000e+00> : vector<4x128xf32>
    %9 = tpu.matmul %8, %0, %cst {dimension_numbers = #tpu.dot_dimension_numbers<[1], [0], [0], [1], [0, 0, 1, 1], [], []>} : vector<4x768xbf16>, vector<768x128xbf16>, vector<4x128xf32> -> vector<4x128xf32>
    %10 = vector.broadcast %1 : vector<1x128xf32> to vector<4x128xf32>
    %11 = arith.addf %9, %10 : vector<4x128xf32>
    %12 = vector.broadcast %5 : vector<4x1xf32> to vector<4x128xf32>
    %13 = arith.addf %11, %12 : vector<4x128xf32>
    %c0_6 = arith.constant 0 : index
    %c0_7 = arith.constant 0 : index
    %c0_8 = arith.constant 0 : index
    %14 = vector.load %arg5[%c0_6, %c0_7, %c0_8] : memref<1x4x128xf32, #tpu.memory_space<vmem>>, vector<1x4x128xf32>
    %15 = vector.shape_cast %14 : vector<1x4x128xf32> to vector<4x128xf32>
    %16 = vector.shape_cast %13 : vector<4x128xf32> to vector<1x4x128xf32>
    tpu.vector_store %arg5[%c0_6, %c0_7, %c0_8], %16 {strides = array<i32>} : memref<1x4x128xf32, #tpu.memory_space<vmem>>, vector<1x4x128xf32>,
    return
  }
  func.func @transform_0(%arg0: i32) -> (i32, i32, i32) {
    %c0_i32 = arith.constant 0 : i32
    %c0_i32_0 = arith.constant 0 : i32
    %c0_i32_1 = arith.constant 0 : i32
    return %arg0, %c0_i32, %c0_i32_0 : i32, i32, i32
  }
  func.func @transform_1(%arg0: i32) -> (i32, i32) {
    %c0_i32 = arith.constant 0 : i32
    %c0_i32_0 = arith.constant 0 : i32
    %c0_i32_1 = arith.constant 0 : i32
    return %c0_i32, %c0_i32_0 : i32, i32
  }
  func.func @transform_2(%arg0: i32) -> (i32, i32) {
    %c0_i32 = arith.constant 0 : i32
    %c0_i32_0 = arith.constant 0 : i32
    %c0_i32_1 = arith.constant 0 : i32
    return %c0_i32, %c0_i32_0 : i32, i32
  }
  func.func @transform_3(%arg0: i32) -> (i32, i32) {
    %c0_i32 = arith.constant 0 : i32
    %c0_i32_0 = arith.constant 0 : i32
    %c0_i32_1 = arith.constant 0 : i32
    return %c0_i32, %c0_i32_0 : i32, i32
  }
  func.func @transform_4(%arg0: i32) -> (i32, i32, i32) {
    %c0_i32 = arith.constant 0 : i32
    %c0_i32_0 = arith.constant 0 : i32
    %c0_i32_1 = arith.constant 0 : i32
    return %arg0, %c0_i32, %c0_i32_0 : i32, i32, i32
  }
}

</mosaic_0001>

<llo_original>
// kernel: tpu_custom_call.1
$region0: #{tpu_custom_call.1}
  #allocation0 [shape = 'u32[]', space=smem, size = 0x4, offset = 0x4, fixed_abs, tag = 'smem constant byte address 0x4 - core index']
  #allocation1 [shape = 'u32[72,128]{1,0:T(1,128)}', space=vmem, size = 0x9000, scoped, tag = 'internal scratch']
  %s0 = inlined_call_operand.hbm [shape: f32[2,4,768], index: 0, kind: input, shape index: {}]
  %s1 = inlined_call_operand.hbm [shape: bf16[768,128], index: 1, kind: input, shape index: {}]
  %s2 = inlined_call_operand.vmem [shape: f32[1,128], index: 2, kind: input, shape index: {}]
  %s3 = inlined_call_operand.vmem [shape: f32[1,128], index: 3, kind: input, shape index: {}]
  %s4 = inlined_call_operand.vmem [shape: f32[2,5,128], index: 4, kind: output, shape index: {}]
  %s5 = sld [smem:[#allocation0]]
  $region57: #{tpu_custom_call.1} parent=0
    _
  %s7 = ssub.s32 1, %s5
  %s8 = scalar_select 0, %s7, %s5
  $region1: #{tpu_custom_call.1} parent=0
    #allocation2 [shape = 'u8[24576]{0}', space=vmem, size = 0x6000, scoped, tag = 'input window, operand 0']
    #allocation3 [shape = 's32[2]{0}', space=sflag, size = 0x8, scoped, tag = 'scoped memory for tpu_custom_call.1']
    #allocation4 [shape = 'u8[196608]{0}', space=vmem, size = 0x30000, scoped, tag = 'input window, operand 1, single buffered']
    #allocation5 [shape = 's32[1]{0}', space=sflag, size = 0x4, scoped, tag = 'scoped memory for tpu_custom_call.1']
    %9 = vsyncpa [#allocation3], 0
    %s10 = scalar_lea.sflag [#allocation3], 1
    %11 = vsyncpa %s10, 0
    %12 = vsyncpa [#allocation5], 0
    loop: start=0, step=1, limit=4
    $region2: #{tpu_custom_call.1} parent=1 // loop_pre_header
      _
    $region3: #{tpu_custom_call.1} parent=1 // loop_header
      %s14 = sphi 0, %s18
      %p15 = scmp.ge.s32.totalorder %s14, 4
      %s24 = sphi 0, %s26
      %s27 = sphi 0, %s24
      %s28 = sphi 0, %s27
      %s44 = sphi 0, %s28
      %s48 = sphi 0, %s48
      %s50 = sphi 0, %s48
      %s51 = sphi 0, %s50
      %s65 = sphi 0, %s51
      %s69 = sphi 0, %s69
      %s71 = sphi 0, %s69
      %s72 = sphi 0, %s71
      %s86 = sphi 0, %s72
      %s90 = sphi 0, %s90
      %s92 = sphi 0, %s90
      %s93 = sphi 0, %s92
      %s107 = sphi 0, %s93
      %s113 = sphi 0, %s115
      %s116 = sphi 0, %s113
      %s117 = sphi 0, %s116
      %s133 = sphi 0, %s117
    $region4: #{tpu_custom_call.1} parent=1 // loop_header_branch
      %17 = sbr.rel (%p15) target = $region8
    $region5: #{tpu_custom_call.1} parent=1 // loop_body
      %s19 = ssub.s32 %s14, 1
      %s20 = ssub.s32 %s14, 2
      %s21 = sadd.s32 %s14, 1
      %s22 = ssub.s32 %s14, %s21
      %p23 = scmp.eq.s32.totalorder %s22, 0
      %s25 = sadd.s32 %s24, 1
      %s26 = scalar_select %p23, %s24, %s25
      %p29 = pneg %p23
      %p30 = scmp.eq.s32.totalorder %s14, 1
      %p31 = por %p29, %p30
      %p32 = scmp.ne.s32.totalorder %s24, %s27
      %p33 = scmp.eq.s32.totalorder %s14, 0
      %p34 = por %p32, %p33
      %p35 = scmp.ne.s32.totalorder %s24, %s27
      %p36 = scmp.eq.s32.totalorder %s19, 1
      %p37 = por %p35, %p36
      %p38 = scmp.ne.s32.totalorder %s27, %s28
      %p39 = scmp.eq.s32.totalorder %s19, 0
      %p40 = por %p38, %p39
      %p41 = scmp.ne.s32.totalorder %s27, %s28
      %p42 = scmp.eq.s32.totalorder %s20, 1
      %p43 = por %p41, %p42
      %p45 = scmp.ne.s32.totalorder %s28, %s44
      %p46 = scmp.eq.s32.totalorder %s20, 0
      %p47 = por %p45, %p46
      %s49 = sadd.s32 %s48, 1
      %p52 = scmp.eq.s32.totalorder %s14, 1
      %p53 = scmp.ne.s32.totalorder %s48, %s50
      %p54 = scmp.eq.s32.totalorder %s14, 0
      %p55 = por %p53, %p54
      %p56 = scmp.ne.s32.totalorder %s48, %s50
      %p57 = scmp.eq.s32.totalorder %s19, 1
      %p58 = por %p56, %p57
      %p59 = scmp.ne.s32.totalorder %s50, %s51
      %p60 = scmp.eq.s32.totalorder %s19, 0
      %p61 = por %p59, %p60
      %p62 = scmp.ne.s32.totalorder %s50, %s51
      %p63 = scmp.eq.s32.totalorder %s20, 1
      %p64 = por %p62, %p63
      %p66 = scmp.ne.s32.totalorder %s51, %s65
      %p67 = scmp.eq.s32.totalorder %s20, 0
      %p68 = por %p66, %p67
      %s70 = sadd.s32 %s69, 1
      %p73 = scmp.eq.s32.totalorder %s14, 1
      %p74 = scmp.ne.s32.totalorder %s69, %s71
      %p75 = scmp.eq.s32.totalorder %s14, 0
      %p76 = por %p74, %p75
      %p77 = scmp.ne.s32.totalorder %s69, %s71
      %p78 = scmp.eq.s32.totalorder %s19, 1
      %p79 = por %p77, %p78
      %p80 = scmp.ne.s32.totalorder %s71, %s72
      %p81 = scmp.eq.s32.totalorder %s19, 0
      %p82 = por %p80, %p81
      %p83 = scmp.ne.s32.totalorder %s71, %s72
      %p84 = scmp.eq.s32.totalorder %s20, 1
      %p85 = por %p83, %p84
      %p87 = scmp.ne.s32.totalorder %s72, %s86
      %p88 = scmp.eq.s32.totalorder %s20, 0
      %p89 = por %p87, %p88
      %s91 = sadd.s32 %s90, 1
      %p94 = scmp.eq.s32.totalorder %s14, 1
      %p95 = scmp.ne.s32.totalorder %s90, %s92
      %p96 = scmp.eq.s32.totalorder %s14, 0
      %p97 = por %p95, %p96
      %p98 = scmp.ne.s32.totalorder %s90, %s92
      %p99 = scmp.eq.s32.totalorder %s19, 1
      %p100 = por %p98, %p99
      %p101 = scmp.ne.s32.totalorder %s92, %s93
      %p102 = scmp.eq.s32.totalorder %s19, 0
      %p103 = por %p101, %p102
      %p104 = scmp.ne.s32.totalorder %s92, %s93
      %p105 = scmp.eq.s32.totalorder %s20, 1
      %p106 = por %p104, %p105
      %p108 = scmp.ne.s32.totalorder %s93, %s107
      %p109 = scmp.eq.s32.totalorder %s20, 0
      %p110 = por %p108, %p109
      %s111 = ssub.s32 %s14, %s21
      %p112 = scmp.eq.s32.totalorder %s111, 0
      %s114 = sadd.s32 %s113, 1
      %s115 = scalar_select %p112, %s113, %s114
      %p118 = pneg %p112
      %p119 = scmp.eq.s32.totalorder %s14, 1
      %p120 = por %p118, %p119
      %p121 = scmp.ne.s32.totalorder %s113, %s116
      %p122 = scmp.eq.s32.totalorder %s14, 0
      %p123 = por %p121, %p122
      %p124 = scmp.ne.s32.totalorder %s113, %s116
      %p125 = scmp.eq.s32.totalorder %s19, 1
      %p126 = por %p124, %p125
      %p127 = scmp.ne.s32.totalorder %s116, %s117
      %p128 = scmp.eq.s32.totalorder %s19, 0
      %p129 = por %p127, %p128
      %p130 = scmp.ne.s32.totalorder %s116, %s117
      %p131 = scmp.eq.s32.totalorder %s20, 1
      %p132 = por %p130, %p131
      %p134 = scmp.ne.s32.totalorder %s117, %s133
      %p135 = scmp.eq.s32.totalorder %s20, 0
      %p136 = por %p134, %p135
      %p137 = scmp.le.s32.totalorder 1, %s14
      %p138 = scmp.lt.s32.totalorder %s14, 3
      %p139 = pnand %p137, %p138
      %p140 = pneg %p139
      // Predicated region
      $region9: #{tpu_custom_call.1} parent=5 // pred_check
        _
      $region10: #{tpu_custom_call.1} parent=5 // pred_check_branch
        %142 = sbr.rel (%p139) target = $region12
      $region11: #{tpu_custom_call.1} parent=5 // pred_region
        %s143 = ssub.s32 %s14, 1
        // Predicated region
        $region13: #{tpu_custom_call.1} parent=11 // pred_check
          %p144 = pneg %p61
        $region14: #{tpu_custom_call.1} parent=11 // pred_check_branch
          %146 = sbr.rel (%p144) target = $region16
        $region15: #{tpu_custom_call.1} parent=11 // pred_region
          %148 = vsyncadd [#allocation5], 0
          %s149 = sshll.u32 %s1, 4
          %s150 = int_to_ptr.hbm [resolvable:$true] %s149
          %s151 = sshll.u32 [#allocation4], 4
          %s152 = int_to_ptr.vmem [resolvable:$true] %s151
          %157 = dma.hbm_to_vmem [thread:$0]  %s150, 6144, %s152, [#allocation5], 64, 64, 4
        $region16: #{tpu_custom_call.1} parent=11 // pred_fallthru
          _
        // Predicated region
        $region17: #{tpu_custom_call.1} parent=11 // pred_check
          %p158 = pneg %p82
        $region18: #{tpu_custom_call.1} parent=11 // pred_check_branch
          %160 = sbr.rel (%p158) target = $region20
        $region19: #{tpu_custom_call.1} parent=11 // pred_region
          _
        $region20: #{tpu_custom_call.1} parent=11 // pred_fallthru
          _
        // Predicated region
        $region21: #{tpu_custom_call.1} parent=11 // pred_check
          %p161 = pneg %p103
        $region22: #{tpu_custom_call.1} parent=11 // pred_check_branch
          %163 = sbr.rel (%p161) target = $region24
        $region23: #{tpu_custom_call.1} parent=11 // pred_region
          _
        $region24: #{tpu_custom_call.1} parent=11 // pred_fallthru
          _
      $region12: #{tpu_custom_call.1} parent=5 // pred_fallthru
        _
      %p164 = scmp.lt.s32.totalorder %s14, 2
      // Predicated region
      $region25: #{tpu_custom_call.1} parent=5 // pred_check
        %p165 = pneg %p164
      $region26: #{tpu_custom_call.1} parent=5 // pred_check_branch
        %167 = sbr.rel (%p165) target = $region28
      $region27: #{tpu_custom_call.1} parent=5 // pred_region
        // Predicated region
        $region29: #{tpu_custom_call.1} parent=27 // pred_check
          %p168 = pneg %p34
        $region30: #{tpu_custom_call.1} parent=27 // pred_check_branch
          %170 = sbr.rel (%p168) target = $region32
        $region31: #{tpu_custom_call.1} parent=27 // pred_region
          %s171 = sand.u32 %s24, 1
          %s172 = scalar_lea.sflag [#allocation3], %s171
          %s173 = sand.u32 %s24, 1
          %s174 = smul.addr %s173, 24
          %s175 = scalar_lea.vmem [#allocation2], %s174
          %177 = vsyncadd %s172, 0
          %s178 = smul.addr %s14, 6
          %s179 = smul.addr %s178, 4
          %s180 = scalar_lea.hbm %s0, %s179
          %s182 = sshll.u32 %s180, 4
          %s183 = int_to_ptr.hbm [resolvable:$true] %s182
          %s184 = sshll.u32 %s175, 4
          %s185 = int_to_ptr.vmem [resolvable:$true] %s184
          %187 = dma.hbm_to_vmem [thread:$0]  %s183, 384, %s185, %s172
        $region32: #{tpu_custom_call.1} parent=27 // pred_fallthru
          _
      $region28: #{tpu_custom_call.1} parent=5 // pred_fallthru
        _
      %p188 = scmp.le.s32.totalorder 1, %s14
      %p189 = scmp.lt.s32.totalorder %s14, 3
      %p190 = pnand %p188, %p189
      %p191 = pneg %p190
      // Predicated region
      $region33: #{tpu_custom_call.1} parent=5 // pred_check
        _
      $region34: #{tpu_custom_call.1} parent=5 // pred_check_branch
        %193 = sbr.rel (%p190) target = $region36
      $region35: #{tpu_custom_call.1} parent=5 // pred_region
        %s194 = ssub.s32 %s14, 1
        %s195 = sand.u32 %s27, 1
        %s196 = scalar_lea.sflag [#allocation3], %s195
        %s197 = sand.u32 %s27, 1
        %s198 = smul.addr %s197, 24
        %s199 = scalar_lea.vmem [#allocation2], %s198
        // Predicated region
        $region37: #{tpu_custom_call.1} parent=35 // pred_check
          %p200 = pneg %p40
        $region38: #{tpu_custom_call.1} parent=35 // pred_check_branch
          %202 = sbr.rel (%p200) target = $region40
        $region39: #{tpu_custom_call.1} parent=35 // pred_region
          %204 = dma.done %s196, 384
        $region40: #{tpu_custom_call.1} parent=35 // pred_fallthru
          _
        // Predicated region
        $region41: #{tpu_custom_call.1} parent=35 // pred_check
          %p205 = pneg %p61
        $region42: #{tpu_custom_call.1} parent=35 // pred_check_branch
          %207 = sbr.rel (%p205) target = $region44
        $region43: #{tpu_custom_call.1} parent=35 // pred_region
          %209 = dma.done [#allocation5], 6144
        $region44: #{tpu_custom_call.1} parent=35 // pred_fallthru
          _
        %s210 = sand.u32 %s27, 1
        %s211 = scalar_lea.sflag [#allocation3], %s210
        %s212 = sand.u32 %s27, 1
        %s213 = smul.addr %s212, 24
        %s214 = scalar_lea.vmem [#allocation2], %s213
        %p215 = pneg %p40
        %p216 = pneg %p37
        %p217 = pneg %p61
        %p218 = pneg %p58
        %p219 = pneg %p82
        %p220 = pneg %p79
        %p221 = pneg %p103
        %p222 = pneg %p100
        %p223 = pneg %p129
        %p224 = pneg %p126
        %p225 = scmp.lt.s32.totalorder %s19, 1
        %s226 = scalar_select %p225, %s19, 1
        %s227 = smul.addr %s226, 8
        %s228 = scalar_lea.vmem %s4, %s227
        %p229 = scmp.lt.s32.totalorder %s19, 1
        %s230 = scalar_select %p229, %s19, 1
        %s231 = smul.addr %s230, 8
        %s232 = scalar_lea.vmem %s4, %s231
        %v233 = vld [vmem:[#allocation4] sm:$0xf]
        %v234 = vld [vmem:[#allocation4 + $0x4] sm:$0xf]
        %v235 = vld [vmem:[#allocation4 + $0x8] sm:$0xf]
        %v236 = vld [vmem:[#allocation4 + $0xc] sm:$0xf]
        %v237 = vld [vmem:[#allocation4 + $0x10] sm:$0xf]
        %v238 = vld [vmem:[#allocation4 + $0x14] sm:$0xf]
        %v239 = vld [vmem:[#allocation4 + $0x18] sm:$0xf]
        %v240 = vld [vmem:[#allocation4 + $0x1c] sm:$0xf]
        %v241 = vld [vmem:[#allocation4 + $0x20] sm:$0xf]
        %v242 = vld [vmem:[#allocation4 + $0x24] sm:$0xf]
        %v243 = vld [vmem:[#allocation4 + $0x28] sm:$0xf]
        %v244 = vld [vmem:[#allocation4 + $0x2c] sm:$0xf]
        %v245 = vld [vmem:[#allocation4 + $0x30] sm:$0xf]
        %v246 = vld [vmem:[#allocation4 + $0x34] sm:$0xf]
        %v247 = vld [vmem:[#allocation4 + $0x38] sm:$0xf]
        %v248 = vld [vmem:[#allocation4 + $0x3c] sm:$0xf]
        %v249 = vld [vmem:[#allocation4 + $0x40] sm:$0xf]
        %v250 = vld [vmem:[#allocation4 + $0x44] sm:$0xf]
        %v251 = vld [vmem:[#allocation4 + $0x48] sm:$0xf]
        %v252 = vld [vmem:[#allocation4 + $0x4c] sm:$0xf]
        %v253 = vld [vmem:[#allocation4 + $0x50] sm:$0xf]
        %v254 = vld [vmem:[#allocation4 + $0x54] sm:$0xf]
        %v255 = vld [vmem:[#allocation4 + $0x58] sm:$0xf]
        %v256 = vld [vmem:[#allocation4 + $0x5c] sm:$0xf]
        %v257 = vld [vmem:[#allocation4 + $0x60] sm:$0xf]
        %v258 = vld [vmem:[#allocation4 + $0x64] sm:$0xf]
        %v259 = vld [vmem:[#allocation4 + $0x68] sm:$0xf]
        %v260 = vld [vmem:[#allocation4 + $0x6c] sm:$0xf]
        %v261 = vld [vmem:[#allocation4 + $0x70] sm:$0xf]
        %v262 = vld [vmem:[#allocation4 + $0x74] sm:$0xf]
        %v263 = vld [vmem:[#allocation4 + $0x78] sm:$0xf]
        %v264 = vld [vmem:[#allocation4 + $0x7c] sm:$0xf]
        %v265 = vld [vmem:[#allocation4 + $0x80] sm:$0xf]
        %v266 = vld [vmem:[#allocation4 + $0x84] sm:$0xf]
        %v267 = vld [vmem:[#allocation4 + $0x88] sm:$0xf]
        %v268 = vld [vmem:[#allocation4 + $0x8c] sm:$0xf]
        %v269 = vld [vmem:[#allocation4 + $0x90] sm:$0xf]
        %v270 = vld [vmem:[#allocation4 + $0x94] sm:$0xf]
        %v271 = vld [vmem:[#allocation4 + $0x98] sm:$0xf]
        %v272 = vld [vmem:[#allocation4 + $0x9c] sm:$0xf]
        %v273 = vld [vmem:[#allocation4 + $0xa0] sm:$0xf]
        %v274 = vld [vmem:[#allocation4 + $0xa4] sm:$0xf]
        %v275 = vld [vmem:[#allocation4 + $0xa8] sm:$0xf]
        %v276 = vld [vmem:[#allocation4 + $0xac] sm:$0xf]
        %v277 = vld [vmem:[#allocation4 + $0xb0] sm:$0xf]
        %v278 = vld [vmem:[#allocation4 + $0xb4] sm:$0xf]
        %v279 = vld [vmem:[#allocation4 + $0xb8] sm:$0xf]
        %v280 = vld [vmem:[#allocation4 + $0xbc] sm:$0xf]
        %v281 = vld [vmem:[#allocation4 + $0xc0] sm:$0xf]
        %v282 = vld [vmem:[#allocation4 + $0xc4] sm:$0xf]
        %v283 = vld [vmem:[#allocation4 + $0xc8] sm:$0xf]
        %v284 = vld [vmem:[#allocation4 + $0xcc] sm:$0xf]
        %v285 = vld [vmem:[#allocation4 + $0xd0] sm:$0xf]
        %v286 = vld [vmem:[#allocation4 + $0xd4] sm:$0xf]
        %v287 = vld [vmem:[#allocation4 + $0xd8] sm:$0xf]
        %v288 = vld [vmem:[#allocation4 + $0xdc] sm:$0xf]
        %v289 = vld [vmem:[#allocation4 + $0xe0] sm:$0xf]
        %v290 = vld [vmem:[#allocation4 + $0xe4] sm:$0xf]
        %v291 = vld [vmem:[#allocation4 + $0xe8] sm:$0xf]
        %v292 = vld [vmem:[#allocation4 + $0xec] sm:$0xf]
        %v293 = vld [vmem:[#allocation4 + $0xf0] sm:$0xf]
        %v294 = vld [vmem:[#allocation4 + $0xf4] sm:$0xf]
        %v295 = vld [vmem:[#allocation4 + $0xf8] sm:$0xf]
        %v296 = vld [vmem:[#allocation4 + $0xfc] sm:$0xf]
        %v297 = vld [vmem:[#allocation4 + $0x100] sm:$0xf]
        %v298 = vld [vmem:[#allocation4 + $0x104] sm:$0xf]
        %v299 = vld [vmem:[#allocation4 + $0x108] sm:$0xf]
        %v300 = vld [vmem:[#allocation4 + $0x10c] sm:$0xf]
        %v301 = vld [vmem:[#allocation4 + $0x110] sm:$0xf]
        %v302 = vld [vmem:[#allocation4 + $0x114] sm:$0xf]
        %v303 = vld [vmem:[#allocation4 + $0x118] sm:$0xf]
        %v304 = vld [vmem:[#allocation4 + $0x11c] sm:$0xf]
        %v305 = vld [vmem:[#allocation4 + $0x120] sm:$0xf]
        %v306 = vld [vmem:[#allocation4 + $0x124] sm:$0xf]
        %v307 = vld [vmem:[#allocation4 + $0x128] sm:$0xf]
        %v308 = vld [vmem:[#allocation4 + $0x12c] sm:$0xf]
        %v309 = vld [vmem:[#allocation4 + $0x130] sm:$0xf]
        %v310 = vld [vmem:[#allocation4 + $0x134] sm:$0xf]
        %v311 = vld [vmem:[#allocation4 + $0x138] sm:$0xf]
        %v312 = vld [vmem:[#allocation4 + $0x13c] sm:$0xf]
        %v313 = vld [vmem:[#allocation4 + $0x140] sm:$0xf]
        %v314 = vld [vmem:[#allocation4 + $0x144] sm:$0xf]
        %v315 = vld [vmem:[#allocation4 + $0x148] sm:$0xf]
        %v316 = vld [vmem:[#allocation4 + $0x14c] sm:$0xf]
        %v317 = vld [vmem:[#allocation4 + $0x150] sm:$0xf]
        %v318 = vld [vmem:[#allocation4 + $0x154] sm:$0xf]
        %v319 = vld [vmem:[#allocation4 + $0x158] sm:$0xf]
        %v320 = vld [vmem:[#allocation4 + $0x15c] sm:$0xf]
        %v321 = vld [vmem:[#allocation4 + $0x160] sm:$0xf]
        %v322 = vld [vmem:[#allocation4 + $0x164] sm:$0xf]
        %v323 = vld [vmem:[#allocation4 + $0x168] sm:$0xf]
        %v324 = vld [vmem:[#allocation4 + $0x16c] sm:$0xf]
        %v325 = vld [vmem:[#allocation4 + $0x170] sm:$0xf]
        %v326 = vld [vmem:[#allocation4 + $0x174] sm:$0xf]
        %v327 = vld [vmem:[#allocation4 + $0x178] sm:$0xf]
        %v328 = vld [vmem:[#allocation4 + $0x17c] sm:$0xf]
        %v329 = vld [vmem:[%s2] sm:$0x1]
        %v330 = vlaneseq
        %v331 = vshrl.u32 %v330, 7
        %v332 = vadd.s32 %v331, 1
        %v333 = vcvt.s32.f32 %v332
        %v334 = vld [vmem:[%s3] sm:$0x1]
        %v335 = vld [vmem:[%s199] sm:$0xff]
        %v336 = vld [vmem:[%s199 + $0x8] sm:$0xff]
        %v337 = vld [vmem:[%s199 + $0x10] sm:$0xff]
        %341 = vst [vmem:[#allocation1] ss:$2 sm:$0xff] %v335
        %s342 = scalar_lea.vmem [#allocation1], 16
        %343 = vst [vmem:[%s342] ss:$2 sm:$0xff] %v336
        %s344 = scalar_lea.vmem [#allocation1], 32
        %345 = vst [vmem:[%s344] ss:$2 sm:$0xff] %v337
        %v346 = vld.sshfl [vmem:[#allocation1] sm:$0xff pattern:$0x75316420]
        %v347 = vld.sshfl [vmem:[#allocation1 + $0x8] sm:$0xff pattern:$0x75316420]
        %v348 = vld.sshfl [vmem:[#allocation1 + $0x10] sm:$0xff pattern:$0x75316420]
        %v349 = vld.sshfl [vmem:[#allocation1 + $0x18] sm:$0xff pattern:$0x75316420]
        %v350 = vld.sshfl [vmem:[#allocation1 + $0x20] sm:$0xff pattern:$0x75316420]
        %v351 = vld.sshfl [vmem:[#allocation1 + $0x28] sm:$0xff pattern:$0x75316420]
        %v358 = vpack.c.bf16 %v346, %v346
        %v359 = vpack.c.bf16 %v347, %v347
        %v360 = vpack.c.bf16 %v348, %v348
        %v361 = vpack.c.bf16 %v349, %v349
        %v362 = vpack.c.bf16 %v350, %v350
        %v363 = vpack.c.bf16 %v351, %v351
        %v365 = vperm.slane %v329, 0
        %v463 = vunpack.c.l.b16 %v233
        %v464 = vunpack.c.l.b16 %v234
        %v465 = vunpack.c.l.b16 %v235
        %v466 = vunpack.c.l.b16 %v236
        %v467 = vunpack.c.l.b16 %v237
        %v468 = vunpack.c.l.b16 %v238
        %v469 = vunpack.c.l.b16 %v239
        %v470 = vunpack.c.l.b16 %v240
        %v471 = vunpack.c.l.b16 %v241
        %v472 = vunpack.c.l.b16 %v242
        %v473 = vunpack.c.l.b16 %v243
        %v474 = vunpack.c.l.b16 %v244
        %v475 = vunpack.c.l.b16 %v245
        %v476 = vunpack.c.l.b16 %v246
        %v477 = vunpack.c.l.b16 %v247
        %v478 = vunpack.c.l.b16 %v248
        %v479 = vunpack.c.l.b16 %v249
        %v480 = vunpack.c.l.b16 %v250
        %v481 = vunpack.c.l.b16 %v251
        %v482 = vunpack.c.l.b16 %v252
        %v483 = vunpack.c.l.b16 %v253
        %v484 = vunpack.c.l.b16 %v254
        %v485 = vunpack.c.l.b16 %v255
        %v486 = vunpack.c.l.b16 %v256
        %v487 = vunpack.c.l.b16 %v257
        %v488 = vunpack.c.l.b16 %v258
        %v489 = vunpack.c.l.b16 %v259
        %v490 = vunpack.c.l.b16 %v260
        %v491 = vunpack.c.l.b16 %v261
        %v492 = vunpack.c.l.b16 %v262
        %v493 = vunpack.c.l.b16 %v263
        %v494 = vunpack.c.l.b16 %v264
        %v495 = vunpack.c.l.b16 %v265
        %v496 = vunpack.c.l.b16 %v266
        %v497 = vunpack.c.l.b16 %v267
        %v498 = vunpack.c.l.b16 %v268
        %v499 = vunpack.c.l.b16 %v269
        %v500 = vunpack.c.l.b16 %v270
        %v501 = vunpack.c.l.b16 %v271
        %v502 = vunpack.c.l.b16 %v272
        %v503 = vunpack.c.l.b16 %v273
        %v504 = vunpack.c.l.b16 %v274
        %v505 = vunpack.c.l.b16 %v275
        %v506 = vunpack.c.l.b16 %v276
        %v507 = vunpack.c.l.b16 %v277
        %v508 = vunpack.c.l.b16 %v278
        %v509 = vunpack.c.l.b16 %v279
        %v510 = vunpack.c.l.b16 %v280
        %v511 = vunpack.c.l.b16 %v281
        %v512 = vunpack.c.l.b16 %v282
        %v513 = vunpack.c.l.b16 %v283
        %v514 = vunpack.c.l.b16 %v284
        %v515 = vunpack.c.l.b16 %v285
        %v516 = vunpack.c.l.b16 %v286
        %v517 = vunpack.c.l.b16 %v287
        %v518 = vunpack.c.l.b16 %v288
        %v519 = vunpack.c.l.b16 %v289
        %v520 = vunpack.c.l.b16 %v290
        %v521 = vunpack.c.l.b16 %v291
        %v522 = vunpack.c.l.b16 %v292
        %v523 = vunpack.c.l.b16 %v293
        %v524 = vunpack.c.l.b16 %v294
        %v525 = vunpack.c.l.b16 %v295
        %v526 = vunpack.c.l.b16 %v296
        %v527 = vunpack.c.l.b16 %v297
        %v528 = vunpack.c.l.b16 %v298
        %v529 = vunpack.c.l.b16 %v299
        %v530 = vunpack.c.l.b16 %v300
        %v531 = vunpack.c.l.b16 %v301
        %v532 = vunpack.c.l.b16 %v302
        %v533 = vunpack.c.l.b16 %v303
        %v534 = vunpack.c.l.b16 %v304
        %v535 = vunpack.c.l.b16 %v305
        %v536 = vunpack.c.l.b16 %v306
        %v537 = vunpack.c.l.b16 %v307
        %v538 = vunpack.c.l.b16 %v308
        %v539 = vunpack.c.l.b16 %v309
        %v540 = vunpack.c.l.b16 %v310
        %v541 = vunpack.c.l.b16 %v311
        %v542 = vunpack.c.l.b16 %v312
        %v543 = vunpack.c.l.b16 %v313
        %v544 = vunpack.c.l.b16 %v314
        %v545 = vunpack.c.l.b16 %v315
        %v546 = vunpack.c.l.b16 %v316
        %v547 = vunpack.c.l.b16 %v317
        %v548 = vunpack.c.l.b16 %v318
        %v549 = vunpack.c.l.b16 %v319
        %v550 = vunpack.c.l.b16 %v320
        %v551 = vunpack.c.l.b16 %v321
        %v552 = vunpack.c.l.b16 %v322
        %v553 = vunpack.c.l.b16 %v323
        %v554 = vunpack.c.l.b16 %v324
        %v555 = vunpack.c.l.b16 %v325
        %v556 = vunpack.c.l.b16 %v326
        %v557 = vunpack.c.l.b16 %v327
        %v558 = vunpack.c.l.b16 %v328
        %v559 = vpack.c.b16 %v464, %v463
        %v560 = vpack.c.b16 %v466, %v465
        %v561 = vpack.c.b16 %v468, %v467
        %v562 = vpack.c.b16 %v470, %v469
        %v563 = vpack.c.b16 %v472, %v471
        %v564 = vpack.c.b16 %v474, %v473
        %v565 = vpack.c.b16 %v476, %v475
        %v566 = vpack.c.b16 %v478, %v477
        %v567 = vpack.c.b16 %v480, %v479
        %v568 = vpack.c.b16 %v482, %v481
        %v569 = vpack.c.b16 %v484, %v483
        %v570 = vpack.c.b16 %v486, %v485
        %v571 = vpack.c.b16 %v488, %v487
        %v572 = vpack.c.b16 %v490, %v489
        %v573 = vpack.c.b16 %v492, %v491
        %v574 = vpack.c.b16 %v494, %v493
        %v575 = vpack.c.b16 %v496, %v495
        %v576 = vpack.c.b16 %v498, %v497
        %v577 = vpack.c.b16 %v500, %v499
        %v578 = vpack.c.b16 %v502, %v501
        %v579 = vpack.c.b16 %v504, %v503
        %v580 = vpack.c.b16 %v506, %v505
        %v581 = vpack.c.b16 %v508, %v507
        %v582 = vpack.c.b16 %v510, %v509
        %v583 = vpack.c.b16 %v512, %v511
        %v584 = vpack.c.b16 %v514, %v513
        %v585 = vpack.c.b16 %v516, %v515
        %v586 = vpack.c.b16 %v518, %v517
        %v587 = vpack.c.b16 %v520, %v519
        %v588 = vpack.c.b16 %v522, %v521
        %v589 = vpack.c.b16 %v524, %v523
        %v590 = vpack.c.b16 %v526, %v525
        %v591 = vpack.c.b16 %v528, %v527
        %v592 = vpack.c.b16 %v530, %v529
        %v593 = vpack.c.b16 %v532, %v531
        %v594 = vpack.c.b16 %v534, %v533
        %v595 = vpack.c.b16 %v536, %v535
        %v596 = vpack.c.b16 %v538, %v537
        %v597 = vpack.c.b16 %v540, %v539
        %v598 = vpack.c.b16 %v542, %v541
        %v599 = vpack.c.b16 %v544, %v543
        %v600 = vpack.c.b16 %v546, %v545
        %v601 = vpack.c.b16 %v548, %v547
        %v602 = vpack.c.b16 %v550, %v549
        %v603 = vpack.c.b16 %v552, %v551
        %v604 = vpack.c.b16 %v554, %v553
        %v605 = vpack.c.b16 %v556, %v555
        %v606 = vpack.c.b16 %v558, %v557
        %655 = vmatpush.bf16.msra.mxu0 %v566
        %656 = vmatpush.bf16.msra.mxu0 %v565
        %657 = vmatpush.bf16.msra.mxu0 %v564
        %658 = vmatpush.bf16.msra.mxu0 %v563
        %659 = vmatpush.bf16.msra.mxu0 %v562
        %660 = vmatpush.bf16.msra.mxu0 %v561
        %661 = vmatpush.bf16.msra.mxu0 %v560
        %662 = vmatpush.bf16.msra.mxu0 %v559
        %663 = vmatmul.bf16.gmra.mxu0 %v358
        %v664 = vpop.f32.mrf.mxu0
        %v665 = vadd.f32 %v365, %v664
        %v666 = vpop.f32.mrf.mxu0
        %667 = vdwg.mxu0
        %668 = vmatpush.bf16.msra.mxu0 %v574
        %669 = vmatpush.bf16.msra.mxu0 %v573
        %670 = vmatpush.bf16.msra.mxu0 %v572
        %671 = vmatpush.bf16.msra.mxu0 %v571
        %672 = vmatpush.bf16.msra.mxu0 %v570
        %673 = vmatpush.bf16.msra.mxu0 %v569
        %674 = vmatpush.bf16.msra.mxu0 %v568
        %675 = vmatpush.bf16.msra.mxu0 %v567
        %676 = vmatmul.bf16.gmra.mxu0 %v359
        %v677 = vpop.f32.mrf.mxu0
        %v678 = vadd.f32 %v665, %v677
        %v679 = vpop.f32.mrf.mxu0
        %680 = vdwg.mxu0
        %681 = vmatpush.bf16.msra.mxu0 %v582
        %682 = vmatpush.bf16.msra.mxu0 %v581
        %683 = vmatpush.bf16.msra.mxu0 %v580
        %684 = vmatpush.bf16.msra.mxu0 %v579
        %685 = vmatpush.bf16.msra.mxu0 %v578
        %686 = vmatpush.bf16.msra.mxu0 %v577
        %687 = vmatpush.bf16.msra.mxu0 %v576
        %688 = vmatpush.bf16.msra.mxu0 %v575
        %689 = vmatmul.bf16.gmra.mxu0 %v360
        %v690 = vpop.f32.mrf.mxu0
        %v691 = vadd.f32 %v678, %v690
        %v692 = vpop.f32.mrf.mxu0
        %693 = vdwg.mxu0
        %694 = vmatpush.bf16.msra.mxu0 %v590
        %695 = vmatpush.bf16.msra.mxu0 %v589
        %696 = vmatpush.bf16.msra.mxu0 %v588
        %697 = vmatpush.bf16.msra.mxu0 %v587
        %698 = vmatpush.bf16.msra.mxu0 %v586
        %699 = vmatpush.bf16.msra.mxu0 %v585
        %700 = vmatpush.bf16.msra.mxu0 %v584
        %701 = vmatpush.bf16.msra.mxu0 %v583
        %702 = vmatmul.bf16.gmra.mxu0 %v361
        %v703 = vpop.f32.mrf.mxu0
        %v704 = vadd.f32 %v691, %v703
        %v705 = vpop.f32.mrf.mxu0
        %706 = vdwg.mxu0
        %707 = vmatpush.bf16.msra.mxu0 %v598
        %708 = vmatpush.bf16.msra.mxu0 %v597
        %709 = vmatpush.bf16.msra.mxu0 %v596
        %710 = vmatpush.bf16.msra.mxu0 %v595
        %711 = vmatpush.bf16.msra.mxu0 %v594
        %712 = vmatpush.bf16.msra.mxu0 %v593
        %713 = vmatpush.bf16.msra.mxu0 %v592
        %714 = vmatpush.bf16.msra.mxu0 %v591
        %715 = vmatmul.bf16.gmra.mxu0 %v362
        %v716 = vpop.f32.mrf.mxu0
        %v717 = vadd.f32 %v704, %v716
        %v718 = vpop.f32.mrf.mxu0
        %719 = vdwg.mxu0
        %720 = vmatpush.bf16.msra.mxu0 %v606
        %721 = vmatpush.bf16.msra.mxu0 %v605
        %722 = vmatpush.bf16.msra.mxu0 %v604
        %723 = vmatpush.bf16.msra.mxu0 %v603
        %724 = vmatpush.bf16.msra.mxu0 %v602
        %725 = vmatpush.bf16.msra.mxu0 %v601
        %726 = vmatpush.bf16.msra.mxu0 %v600
        %727 = vmatpush.bf16.msra.mxu0 %v599
        %728 = vmatmul.bf16.gmra.mxu0 %v363
        %v729 = vpop.f32.mrf.mxu0
        %v730 = vadd.f32 %v717, %v729
        %v731 = vpop.f32.mrf.mxu0
        %732 = vdwg.mxu0
        %v733 = vadd.f32 %v730, %v333
        %734 = vst [vmem:[%s232] sm:$0x1] %v334
        %735 = vst [vmem:[%s232 + $0x1] sm:$0xf] %v733
        %p736 = scmp.lt.s32.totalorder %s19, 1
        %s737 = scalar_select %p736, %s19, 1
        %s738 = smul.addr %s737, 8
        %s739 = scalar_lea.vmem %s4, %s738
        // Predicated region
        $region45: #{tpu_custom_call.1} parent=35 // pred_check
          %p740 = pneg %p126
        $region46: #{tpu_custom_call.1} parent=35 // pred_check_branch
          %742 = sbr.rel (%p740) target = $region48
        $region47: #{tpu_custom_call.1} parent=35 // pred_region
          _
        $region48: #{tpu_custom_call.1} parent=35 // pred_fallthru
          _
      $region36: #{tpu_custom_call.1} parent=5 // pred_fallthru
        _
      %p743 = scmp.le.s32.totalorder 2, %s14
      // Predicated region
      $region49: #{tpu_custom_call.1} parent=5 // pred_check
        %p744 = pneg %p743
      $region50: #{tpu_custom_call.1} parent=5 // pred_check_branch
        %746 = sbr.rel (%p744) target = $region52
      $region51: #{tpu_custom_call.1} parent=5 // pred_region
        %s747 = ssub.s32 %s14, 2
        // Predicated region
        $region53: #{tpu_custom_call.1} parent=51 // pred_check
          %p748 = pneg %p132
        $region54: #{tpu_custom_call.1} parent=51 // pred_check_branch
          %750 = sbr.rel (%p748) target = $region56
        $region55: #{tpu_custom_call.1} parent=51 // pred_region
          %p751 = scmp.lt.s32.totalorder %s20, 1
          %s752 = scalar_select %p751, %s20, 1
          %s753 = smul.addr %s752, 8
          %s754 = scalar_lea.vmem %s4, %s753
        $region56: #{tpu_custom_call.1} parent=51 // pred_fallthru
          _
      $region52: #{tpu_custom_call.1} parent=5 // pred_fallthru
        _
    $region6: #{tpu_custom_call.1} parent=1 // loop_footer
      %s18 = sadd.s32 1, %s14
    $region7: #{tpu_custom_call.1} parent=1 // loop_footer_branch
      %13 = sbr.rel target = $region3
    $region8: #{tpu_custom_call.1} parent=1 // loop_exit
      _
    %755 = vsyncpa [#allocation3], 1
    %s756 = scalar_lea.sflag [#allocation3], 1
    %757 = vsyncpa %s756, 1
    %758 = vsyncpa [#allocation5], 1

// kernel: tpu_custom_call.1
$region0: #{tpu_custom_call.1}
  #allocation0 [shape = 'u32[]', space=smem, size = 0x4, offset = 0x4, fixed_abs, tag = 'smem constant byte address 0x4 - core index']
  #allocation1 [shape = 'u32[72,128]{1,0:T(1,128)}', space=vmem, size = 0x9000, scoped, tag = 'internal scratch']
  %s0 = inlined_call_operand.hbm [shape: f32[2,4,768], index: 0, kind: input, shape index: {}]
  %s1 = inlined_call_operand.hbm [shape: bf16[768,128], index: 1, kind: input, shape index: {}]
  %s2 = inlined_call_operand.vmem [shape: f32[1,128], index: 2, kind: input, shape index: {}]
  %s3 = inlined_call_operand.vmem [shape: f32[1,128], index: 3, kind: input, shape index: {}]
  %s4 = inlined_call_operand.vmem [shape: f32[2,5,128], index: 4, kind: output, shape index: {}]
  %s5 = sld [smem:[#allocation0]]
  $region57: #{tpu_custom_call.1} parent=0
    _
  %s7 = ssub.s32 1, %s5
  %s8 = scalar_select 0, %s7, %s5
  $region1: #{tpu_custom_call.1} parent=0
    #allocation2 [shape = 'u8[24576]{0}', space=vmem, size = 0x6000, scoped, tag = 'input window, operand 0']
    #allocation3 [shape = 's32[2]{0}', space=sflag, size = 0x8, scoped, tag = 'scoped memory for tpu_custom_call.1']
    #allocation4 [shape = 'u8[196608]{0}', space=vmem, size = 0x30000, scoped, tag = 'input window, operand 1, single buffered']
    #allocation5 [shape = 's32[1]{0}', space=sflag, size = 0x4, scoped, tag = 'scoped memory for tpu_custom_call.1']
    %9 = vsyncpa [#allocation3], 0
    %s10 = scalar_lea.sflag [#allocation3], 1
    %11 = vsyncpa %s10, 0
    %12 = vsyncpa [#allocation5], 0
    loop: start=0, step=1, limit=4
    $region2: #{tpu_custom_call.1} parent=1 // loop_pre_header
      _
    $region3: #{tpu_custom_call.1} parent=1 // loop_header
      %s14 = sphi 0, %s18
      %p15 = scmp.ge.s32.totalorder %s14, 4
      %s24 = sphi 0, %s26
      %s27 = sphi 0, %s24
      %s28 = sphi 0, %s27
      %s44 = sphi 0, %s28
      %s48 = sphi 0, %s48
      %s50 = sphi 0, %s48
      %s51 = sphi 0, %s50
      %s65 = sphi 0, %s51
      %s69 = sphi 0, %s69
      %s71 = sphi 0, %s69
      %s72 = sphi 0, %s71
      %s86 = sphi 0, %s72
      %s90 = sphi 0, %s90
      %s92 = sphi 0, %s90
      %s93 = sphi 0, %s92
      %s107 = sphi 0, %s93
      %s113 = sphi 0, %s115
      %s116 = sphi 0, %s113
      %s117 = sphi 0, %s116
      %s133 = sphi 0, %s117
    $region4: #{tpu_custom_call.1} parent=1 // loop_header_branch
      %17 = sbr.rel (%p15) target = $region8
    $region5: #{tpu_custom_call.1} parent=1 // loop_body
      %s19 = ssub.s32 %s14, 1
      %s20 = ssub.s32 %s14, 2
      %s21 = sadd.s32 %s14, 1
      %s22 = ssub.s32 %s14, %s21
      %p23 = scmp.eq.s32.totalorder %s22, 0
      %s25 = sadd.s32 %s24, 1
      %s26 = scalar_select %p23, %s24, %s25
      %p29 = pneg %p23
      %p30 = scmp.eq.s32.totalorder %s14, 1
      %p31 = por %p29, %p30
      %p32 = scmp.ne.s32.totalorder %s24, %s27
      %p33 = scmp.eq.s32.totalorder %s14, 0
      %p34 = por %p32, %p33
      %p35 = scmp.ne.s32.totalorder %s24, %s27
      %p36 = scmp.eq.s32.totalorder %s19, 1
      %p37 = por %p35, %p36
      %p38 = scmp.ne.s32.totalorder %s27, %s28
      %p39 = scmp.eq.s32.totalorder %s19, 0
      %p40 = por %p38, %p39
      %p41 = scmp.ne.s32.totalorder %s27, %s28
      %p42 = scmp.eq.s32.totalorder %s20, 1
      %p43 = por %p41, %p42
      %p45 = scmp.ne.s32.totalorder %s28, %s44
      %p46 = scmp.eq.s32.totalorder %s20, 0
      %p47 = por %p45, %p46
      %s49 = sadd.s32 %s48, 1
      %p52 = scmp.eq.s32.totalorder %s14, 1
      %p53 = scmp.ne.s32.totalorder %s48, %s50
      %p54 = scmp.eq.s32.totalorder %s14, 0
      %p55 = por %p53, %p54
      %p56 = scmp.ne.s32.totalorder %s48, %s50
      %p57 = scmp.eq.s32.totalorder %s19, 1
      %p58 = por %p56, %p57
      %p59 = scmp.ne.s32.totalorder %s50, %s51
      %p60 = scmp.eq.s32.totalorder %s19, 0
      %p61 = por %p59, %p60
      %p62 = scmp.ne.s32.totalorder %s50, %s51
      %p63 = scmp.eq.s32.totalorder %s20, 1
      %p64 = por %p62, %p63
      %p66 = scmp.ne.s32.totalorder %s51, %s65
      %p67 = scmp.eq.s32.totalorder %s20, 0
      %p68 = por %p66, %p67
      %s70 = sadd.s32 %s69, 1
      %p73 = scmp.eq.s32.totalorder %s14, 1
      %p74 = scmp.ne.s32.totalorder %s69, %s71
      %p75 = scmp.eq.s32.totalorder %s14, 0
      %p76 = por %p74, %p75
      %p77 = scmp.ne.s32.totalorder %s69, %s71
      %p78 = scmp.eq.s32.totalorder %s19, 1
      %p79 = por %p77, %p78
      %p80 = scmp.ne.s32.totalorder %s71, %s72
      %p81 = scmp.eq.s32.totalorder %s19, 0
      %p82 = por %p80, %p81
      %p83 = scmp.ne.s32.totalorder %s71, %s72
      %p84 = scmp.eq.s32.totalorder %s20, 1
      %p85 = por %p83, %p84
      %p87 = scmp.ne.s32.totalorder %s72, %s86
      %p88 = scmp.eq.s32.totalorder %s20, 0
      %p89 = por %p87, %p88
      %s91 = sadd.s32 %s90, 1
      %p94 = scmp.eq.s32.totalorder %s14, 1
      %p95 = scmp.ne.s32.totalorder %s90, %s92
      %p96 = scmp.eq.s32.totalorder %s14, 0
      %p97 = por %p95, %p96
      %p98 = scmp.ne.s32.totalorder %s90, %s92
      %p99 = scmp.eq.s32.totalorder %s19, 1
      %p100 = por %p98, %p99
      %p101 = scmp.ne.s32.totalorder %s92, %s93
      %p102 = scmp.eq.s32.totalorder %s19, 0
      %p103 = por %p101, %p102
      %p104 = scmp.ne.s32.totalorder %s92, %s93
      %p105 = scmp.eq.s32.totalorder %s20, 1
      %p106 = por %p104, %p105
      %p108 = scmp.ne.s32.totalorder %s93, %s107
      %p109 = scmp.eq.s32.totalorder %s20, 0
      %p110 = por %p108, %p109
      %s111 = ssub.s32 %s14, %s21
      %p112 = scmp.eq.s32.totalorder %s111, 0
      %s114 = sadd.s32 %s113, 1
      %s115 = scalar_select %p112, %s113, %s114
      %p118 = pneg %p112
      %p119 = scmp.eq.s32.totalorder %s14, 1
      %p120 = por %p118, %p119
      %p121 = scmp.ne.s32.totalorder %s113, %s116
      %p122 = scmp.eq.s32.totalorder %s14, 0
      %p123 = por %p121, %p122
      %p124 = scmp.ne.s32.totalorder %s113, %s116
      %p125 = scmp.eq.s32.totalorder %s19, 1
      %p126 = por %p124, %p125
      %p127 = scmp.ne.s32.totalorder %s116, %s117
      %p128 = scmp.eq.s32.totalorder %s19, 0
      %p129 = por %p127, %p128
      %p130 = scmp.ne.s32.totalorder %s116, %s117
      %p131 = scmp.eq.s32.totalorder %s20, 1
      %p132 = por %p130, %p131
      %p134 = scmp.ne.s32.totalorder %s117, %s133
      %p135 = scmp.eq.s32.totalorder %s20, 0
      %p136 = por %p134, %p135
      %p137 = scmp.le.s32.totalorder 1, %s14
      %p138 = scmp.lt.s32.totalorder %s14, 3
      %p139 = pnand %p137, %p138
      %p140 = pneg %p139
      // Predicated region
      $region9: #{tpu_custom_call.1} parent=5 // pred_check
        _
      $region10: #{tpu_custom_call.1} parent=5 // pred_check_branch
        %142 = sbr.rel (%p139) target = $region12
      $region11: #{tpu_custom_call.1} parent=5 // pred_region
        %s143 = ssub.s32 %s14, 1
        // Predicated region
        $region13: #{tpu_custom_call.1} parent=11 // pred_check
          %p144 = pneg %p61
        $region14: #{tpu_custom_call.1} parent=11 // pred_check_branch
          %146 = sbr.rel (%p144) target = $region16
        $region15: #{tpu_custom_call.1} parent=11 // pred_region
          %148 = vsyncadd [#allocation5], 0
          %s149 = sshll.u32 %s1, 4
          %s150 = int_to_ptr.hbm [resolvable:$true] %s149
          %s151 = sshll.u32 [#allocation4], 4
          %s152 = int_to_ptr.vmem [resolvable:$true] %s151
          %157 = dma.hbm_to_vmem [thread:$0]  %s150, 6144, %s152, [#allocation5], 64, 64, 4
        $region16: #{tpu_custom_call.1} parent=11 // pred_fallthru
          _
        // Predicated region
        $region17: #{tpu_custom_call.1} parent=11 // pred_check
          %p158 = pneg %p82
        $region18: #{tpu_custom_call.1} parent=11 // pred_check_branch
          %160 = sbr.rel (%p158) target = $region20
        $region19: #{tpu_custom_call.1} parent=11 // pred_region
          _
        $region20: #{tpu_custom_call.1} parent=11 // pred_fallthru
          _
        // Predicated region
        $region21: #{tpu_custom_call.1} parent=11 // pred_check
          %p161 = pneg %p103
        $region22: #{tpu_custom_call.1} parent=11 // pred_check_branch
          %163 = sbr.rel (%p161) target = $region24
        $region23: #{tpu_custom_call.1} parent=11 // pred_region
          _
        $region24: #{tpu_custom_call.1} parent=11 // pred_fallthru
          _
      $region12: #{tpu_custom_call.1} parent=5 // pred_fallthru
        _
      %p164 = scmp.lt.s32.totalorder %s14, 2
      // Predicated region
      $region25: #{tpu_custom_call.1} parent=5 // pred_check
        %p165 = pneg %p164
      $region26: #{tpu_custom_call.1} parent=5 // pred_check_branch
        %167 = sbr.rel (%p165) target = $region28
      $region27: #{tpu_custom_call.1} parent=5 // pred_region
        // Predicated region
        $region29: #{tpu_custom_call.1} parent=27 // pred_check
          %p168 = pneg %p34
        $region30: #{tpu_custom_call.1} parent=27 // pred_check_branch
          %170 = sbr.rel (%p168) target = $region32
        $region31: #{tpu_custom_call.1} parent=27 // pred_region
          %s171 = sand.u32 %s24, 1
          %s172 = scalar_lea.sflag [#allocation3], %s171
          %s173 = sand.u32 %s24, 1
          %s174 = smul.addr %s173, 24
          %s175 = scalar_lea.vmem [#allocation2], %s174
          %177 = vsyncadd %s172, 0
          %s178 = smul.addr %s14, 6
          %s179 = smul.addr %s178, 4
          %s180 = scalar_lea.hbm %s0, %s179
          %s182 = sshll.u32 %s180, 4
          %s183 = int_to_ptr.hbm [resolvable:$true] %s182
          %s184 = sshll.u32 %s175, 4
          %s185 = int_to_ptr.vmem [resolvable:$true] %s184
          %187 = dma.hbm_to_vmem [thread:$0]  %s183, 384, %s185, %s172
        $region32: #{tpu_custom_call.1} parent=27 // pred_fallthru
          _
      $region28: #{tpu_custom_call.1} parent=5 // pred_fallthru
        _
      %p188 = scmp.le.s32.totalorder 1, %s14
      %p189 = scmp.lt.s32.totalorder %s14, 3
      %p190 = pnand %p188, %p189
      %p191 = pneg %p190
      // Predicated region
      $region33: #{tpu_custom_call.1} parent=5 // pred_check
        _
      $region34: #{tpu_custom_call.1} parent=5 // pred_check_branch
        %193 = sbr.rel (%p190) target = $region36
      $region35: #{tpu_custom_call.1} parent=5 // pred_region
        %s194 = ssub.s32 %s14, 1
        %s195 = sand.u32 %s27, 1
        %s196 = scalar_lea.sflag [#allocation3], %s195
        %s197 = sand.u32 %s27, 1
        %s198 = smul.addr %s197, 24
        %s199 = scalar_lea.vmem [#allocation2], %s198
        // Predicated region
        $region37: #{tpu_custom_call.1} parent=35 // pred_check
          %p200 = pneg %p40
        $region38: #{tpu_custom_call.1} parent=35 // pred_check_branch
          %202 = sbr.rel (%p200) target = $region40
        $region39: #{tpu_custom_call.1} parent=35 // pred_region
          %204 = dma.done %s196, 384
        $region40: #{tpu_custom_call.1} parent=35 // pred_fallthru
          _
        // Predicated region
        $region41: #{tpu_custom_call.1} parent=35 // pred_check
          %p205 = pneg %p61
        $region42: #{tpu_custom_call.1} parent=35 // pred_check_branch
          %207 = sbr.rel (%p205) target = $region44
        $region43: #{tpu_custom_call.1} parent=35 // pred_region
          %209 = dma.done [#allocation5], 6144
        $region44: #{tpu_custom_call.1} parent=35 // pred_fallthru
          _
        %s210 = sand.u32 %s27, 1
        %s211 = scalar_lea.sflag [#allocation3], %s210
        %s212 = sand.u32 %s27, 1
        %s213 = smul.addr %s212, 24
        %s214 = scalar_lea.vmem [#allocation2], %s213
        %p215 = pneg %p40
        %p216 = pneg %p37
        %p217 = pneg %p61
        %p218 = pneg %p58
        %p219 = pneg %p82
        %p220 = pneg %p79
        %p221 = pneg %p103
        %p222 = pneg %p100
        %p223 = pneg %p129
        %p224 = pneg %p126
        %p225 = scmp.lt.s32.totalorder %s19, 1
        %s226 = scalar_select %p225, %s19, 1
        %s227 = smul.addr %s226, 8
        %s228 = scalar_lea.vmem %s4, %s227
        %p229 = scmp.lt.s32.totalorder %s19, 1
        %s230 = scalar_select %p229, %s19, 1
        %s231 = smul.addr %s230, 8
        %s232 = scalar_lea.vmem %s4, %s231
        %v233 = vld [vmem:[#allocation4] sm:$0xf]
        %v234 = vld [vmem:[#allocation4 + $0x4] sm:$0xf]
        %v235 = vld [vmem:[#allocation4 + $0x8] sm:$0xf]
        %v236 = vld [vmem:[#allocation4 + $0xc] sm:$0xf]
        %v237 = vld [vmem:[#allocation4 + $0x10] sm:$0xf]
        %v238 = vld [vmem:[#allocation4 + $0x14] sm:$0xf]
        %v239 = vld [vmem:[#allocation4 + $0x18] sm:$0xf]
        %v240 = vld [vmem:[#allocation4 + $0x1c] sm:$0xf]
        %v241 = vld [vmem:[#allocation4 + $0x20] sm:$0xf]
        %v242 = vld [vmem:[#allocation4 + $0x24] sm:$0xf]
        %v243 = vld [vmem:[#allocation4 + $0x28] sm:$0xf]
        %v244 = vld [vmem:[#allocation4 + $0x2c] sm:$0xf]
        %v245 = vld [vmem:[#allocation4 + $0x30] sm:$0xf]
        %v246 = vld [vmem:[#allocation4 + $0x34] sm:$0xf]
        %v247 = vld [vmem:[#allocation4 + $0x38] sm:$0xf]
        %v248 = vld [vmem:[#allocation4 + $0x3c] sm:$0xf]
        %v249 = vld [vmem:[#allocation4 + $0x40] sm:$0xf]
        %v250 = vld [vmem:[#allocation4 + $0x44] sm:$0xf]
        %v251 = vld [vmem:[#allocation4 + $0x48] sm:$0xf]
        %v252 = vld [vmem:[#allocation4 + $0x4c] sm:$0xf]
        %v253 = vld [vmem:[#allocation4 + $0x50] sm:$0xf]
        %v254 = vld [vmem:[#allocation4 + $0x54] sm:$0xf]
        %v255 = vld [vmem:[#allocation4 + $0x58] sm:$0xf]
        %v256 = vld [vmem:[#allocation4 + $0x5c] sm:$0xf]
        %v257 = vld [vmem:[#allocation4 + $0x60] sm:$0xf]
        %v258 = vld [vmem:[#allocation4 + $0x64] sm:$0xf]
        %v259 = vld [vmem:[#allocation4 + $0x68] sm:$0xf]
        %v260 = vld [vmem:[#allocation4 + $0x6c] sm:$0xf]
        %v261 = vld [vmem:[#allocation4 + $0x70] sm:$0xf]
        %v262 = vld [vmem:[#allocation4 + $0x74] sm:$0xf]
        %v263 = vld [vmem:[#allocation4 + $0x78] sm:$0xf]
        %v264 = vld [vmem:[#allocation4 + $0x7c] sm:$0xf]
        %v265 = vld [vmem:[#allocation4 + $0x80] sm:$0xf]
        %v266 = vld [vmem:[#allocation4 + $0x84] sm:$0xf]
        %v267 = vld [vmem:[#allocation4 + $0x88] sm:$0xf]
        %v268 = vld [vmem:[#allocation4 + $0x8c] sm:$0xf]
        %v269 = vld [vmem:[#allocation4 + $0x90] sm:$0xf]
        %v270 = vld [vmem:[#allocation4 + $0x94] sm:$0xf]
        %v271 = vld [vmem:[#allocation4 + $0x98] sm:$0xf]
        %v272 = vld [vmem:[#allocation4 + $0x9c] sm:$0xf]
        %v273 = vld [vmem:[#allocation4 + $0xa0] sm:$0xf]
        %v274 = vld [vmem:[#allocation4 + $0xa4] sm:$0xf]
        %v275 = vld [vmem:[#allocation4 + $0xa8] sm:$0xf]
        %v276 = vld [vmem:[#allocation4 + $0xac] sm:$0xf]
        %v277 = vld [vmem:[#allocation4 + $0xb0] sm:$0xf]
        %v278 = vld [vmem:[#allocation4 + $0xb4] sm:$0xf]
        %v279 = vld [vmem:[#allocation4 + $0xb8] sm:$0xf]
        %v280 = vld [vmem:[#allocation4 + $0xbc] sm:$0xf]
        %v281 = vld [vmem:[#allocation4 + $0xc0] sm:$0xf]
        %v282 = vld [vmem:[#allocation4 + $0xc4] sm:$0xf]
        %v283 = vld [vmem:[#allocation4 + $0xc8] sm:$0xf]
        %v284 = vld [vmem:[#allocation4 + $0xcc] sm:$0xf]
        %v285 = vld [vmem:[#allocation4 + $0xd0] sm:$0xf]
        %v286 = vld [vmem:[#allocation4 + $0xd4] sm:$0xf]
        %v287 = vld [vmem:[#allocation4 + $0xd8] sm:$0xf]
        %v288 = vld [vmem:[#allocation4 + $0xdc] sm:$0xf]
        %v289 = vld [vmem:[#allocation4 + $0xe0] sm:$0xf]
        %v290 = vld [vmem:[#allocation4 + $0xe4] sm:$0xf]
        %v291 = vld [vmem:[#allocation4 + $0xe8] sm:$0xf]
        %v292 = vld [vmem:[#allocation4 + $0xec] sm:$0xf]
        %v293 = vld [vmem:[#allocation4 + $0xf0] sm:$0xf]
        %v294 = vld [vmem:[#allocation4 + $0xf4] sm:$0xf]
        %v295 = vld [vmem:[#allocation4 + $0xf8] sm:$0xf]
        %v296 = vld [vmem:[#allocation4 + $0xfc] sm:$0xf]
        %v297 = vld [vmem:[#allocation4 + $0x100] sm:$0xf]
        %v298 = vld [vmem:[#allocation4 + $0x104] sm:$0xf]
        %v299 = vld [vmem:[#allocation4 + $0x108] sm:$0xf]
        %v300 = vld [vmem:[#allocation4 + $0x10c] sm:$0xf]
        %v301 = vld [vmem:[#allocation4 + $0x110] sm:$0xf]
        %v302 = vld [vmem:[#allocation4 + $0x114] sm:$0xf]
        %v303 = vld [vmem:[#allocation4 + $0x118] sm:$0xf]
        %v304 = vld [vmem:[#allocation4 + $0x11c] sm:$0xf]
        %v305 = vld [vmem:[#allocation4 + $0x120] sm:$0xf]
        %v306 = vld [vmem:[#allocation4 + $0x124] sm:$0xf]
        %v307 = vld [vmem:[#allocation4 + $0x128] sm:$0xf]
        %v308 = vld [vmem:[#allocation4 + $0x12c] sm:$0xf]
        %v309 = vld [vmem:[#allocation4 + $0x130] sm:$0xf]
        %v310 = vld [vmem:[#allocation4 + $0x134] sm:$0xf]
        %v311 = vld [vmem:[#allocation4 + $0x138] sm:$0xf]
        %v312 = vld [vmem:[#allocation4 + $0x13c] sm:$0xf]
        %v313 = vld [vmem:[#allocation4 + $0x140] sm:$0xf]
        %v314 = vld [vmem:[#allocation4 + $0x144] sm:$0xf]
        %v315 = vld [vmem:[#allocation4 + $0x148] sm:$0xf]
        %v316 = vld [vmem:[#allocation4 + $0x14c] sm:$0xf]
        %v317 = vld [vmem:[#allocation4 + $0x150] sm:$0xf]
        %v318 = vld [vmem:[#allocation4 + $0x154] sm:$0xf]
        %v319 = vld [vmem:[#allocation4 + $0x158] sm:$0xf]
        %v320 = vld [vmem:[#allocation4 + $0x15c] sm:$0xf]
        %v321 = vld [vmem:[#allocation4 + $0x160] sm:$0xf]
        %v322 = vld [vmem:[#allocation4 + $0x164] sm:$0xf]
        %v323 = vld [vmem:[#allocation4 + $0x168] sm:$0xf]
        %v324 = vld [vmem:[#allocation4 + $0x16c] sm:$0xf]
        %v325 = vld [vmem:[#allocation4 + $0x170] sm:$0xf]
        %v326 = vld [vmem:[#allocation4 + $0x174] sm:$0xf]
        %v327 = vld [vmem:[#allocation4 + $0x178] sm:$0xf]
        %v328 = vld [vmem:[#allocation4 + $0x17c] sm:$0xf]
        %v329 = vld [vmem:[%s2] sm:$0x1]
        %v330 = vlaneseq
        %v331 = vshrl.u32 %v330, 7
        %v332 = vadd.s32 %v331, 1
        %v333 = vcvt.s32.f32 %v332
        %v334 = vld [vmem:[%s3] sm:$0x1]
        %v335 = vld [vmem:[%s199] sm:$0xff]
        %v336 = vld [vmem:[%s199 + $0x8] sm:$0xff]
        %v337 = vld [vmem:[%s199 + $0x10] sm:$0xff]
        %341 = vst [vmem:[#allocation1] ss:$2 sm:$0xff] %v335
        %s342 = scalar_lea.vmem [#allocation1], 16
        %343 = vst [vmem:[%s342] ss:$2 sm:$0xff] %v336
        %s344 = scalar_lea.vmem [#allocation1], 32
        %345 = vst [vmem:[%s344] ss:$2 sm:$0xff] %v337
        %v346 = vld.sshfl [vmem:[#allocation1] sm:$0xff pattern:$0x75316420]
        %v347 = vld.sshfl [vmem:[#allocation1 + $0x8] sm:$0xff pattern:$0x75316420]
        %v348 = vld.sshfl [vmem:[#allocation1 + $0x10] sm:$0xff pattern:$0x75316420]
        %v349 = vld.sshfl [vmem:[#allocation1 + $0x18] sm:$0xff pattern:$0x75316420]
        %v350 = vld.sshfl [vmem:[#allocation1 + $0x20] sm:$0xff pattern:$0x75316420]
        %v351 = vld.sshfl [vmem:[#allocation1 + $0x28] sm:$0xff pattern:$0x75316420]
        %v358 = vpack.c.bf16 %v346, %v346
        %v359 = vpack.c.bf16 %v347, %v347
        %v360 = vpack.c.bf16 %v348, %v348
        %v361 = vpack.c.bf16 %v349, %v349
        %v362 = vpack.c.bf16 %v350, %v350
        %v363 = vpack.c.bf16 %v351, %v351
        %v365 = vperm.slane %v329, 0
        %v463 = vunpack.c.l.b16 %v233
        %v464 = vunpack.c.l.b16 %v234
        %v465 = vunpack.c.l.b16 %v235
        %v466 = vunpack.c.l.b16 %v236
        %v467 = vunpack.c.l.b16 %v237
        %v468 = vunpack.c.l.b16 %v238
        %v469 = vunpack.c.l.b16 %v239
        %v470 = vunpack.c.l.b16 %v240
        %v471 = vunpack.c.l.b16 %v241
        %v472 = vunpack.c.l.b16 %v242
        %v473 = vunpack.c.l.b16 %v243
        %v474 = vunpack.c.l.b16 %v244
        %v475 = vunpack.c.l.b16 %v245
        %v476 = vunpack.c.l.b16 %v246
        %v477 = vunpack.c.l.b16 %v247
        %v478 = vunpack.c.l.b16 %v248
        %v479 = vunpack.c.l.b16 %v249
        %v480 = vunpack.c.l.b16 %v250
        %v481 = vunpack.c.l.b16 %v251
        %v482 = vunpack.c.l.b16 %v252
        %v483 = vunpack.c.l.b16 %v253
        %v484 = vunpack.c.l.b16 %v254
        %v485 = vunpack.c.l.b16 %v255
        %v486 = vunpack.c.l.b16 %v256
        %v487 = vunpack.c.l.b16 %v257
        %v488 = vunpack.c.l.b16 %v258
        %v489 = vunpack.c.l.b16 %v259
        %v490 = vunpack.c.l.b16 %v260
        %v491 = vunpack.c.l.b16 %v261
        %v492 = vunpack.c.l.b16 %v262
        %v493 = vunpack.c.l.b16 %v263
        %v494 = vunpack.c.l.b16 %v264
        %v495 = vunpack.c.l.b16 %v265
        %v496 = vunpack.c.l.b16 %v266
        %v497 = vunpack.c.l.b16 %v267
        %v498 = vunpack.c.l.b16 %v268
        %v499 = vunpack.c.l.b16 %v269
        %v500 = vunpack.c.l.b16 %v270
        %v501 = vunpack.c.l.b16 %v271
        %v502 = vunpack.c.l.b16 %v272
        %v503 = vunpack.c.l.b16 %v273
        %v504 = vunpack.c.l.b16 %v274
        %v505 = vunpack.c.l.b16 %v275
        %v506 = vunpack.c.l.b16 %v276
        %v507 = vunpack.c.l.b16 %v277
        %v508 = vunpack.c.l.b16 %v278
        %v509 = vunpack.c.l.b16 %v279
        %v510 = vunpack.c.l.b16 %v280
        %v511 = vunpack.c.l.b16 %v281
        %v512 = vunpack.c.l.b16 %v282
        %v513 = vunpack.c.l.b16 %v283
        %v514 = vunpack.c.l.b16 %v284
        %v515 = vunpack.c.l.b16 %v285
        %v516 = vunpack.c.l.b16 %v286
        %v517 = vunpack.c.l.b16 %v287
        %v518 = vunpack.c.l.b16 %v288
        %v519 = vunpack.c.l.b16 %v289
        %v520 = vunpack.c.l.b16 %v290
        %v521 = vunpack.c.l.b16 %v291
        %v522 = vunpack.c.l.b16 %v292
        %v523 = vunpack.c.l.b16 %v293
        %v524 = vunpack.c.l.b16 %v294
        %v525 = vunpack.c.l.b16 %v295
        %v526 = vunpack.c.l.b16 %v296
        %v527 = vunpack.c.l.b16 %v297
        %v528 = vunpack.c.l.b16 %v298
        %v529 = vunpack.c.l.b16 %v299
        %v530 = vunpack.c.l.b16 %v300
        %v531 = vunpack.c.l.b16 %v301
        %v532 = vunpack.c.l.b16 %v302
        %v533 = vunpack.c.l.b16 %v303
        %v534 = vunpack.c.l.b16 %v304
        %v535 = vunpack.c.l.b16 %v305
        %v536 = vunpack.c.l.b16 %v306
        %v537 = vunpack.c.l.b16 %v307
        %v538 = vunpack.c.l.b16 %v308
        %v539 = vunpack.c.l.b16 %v309
        %v540 = vunpack.c.l.b16 %v310
        %v541 = vunpack.c.l.b16 %v311
        %v542 = vunpack.c.l.b16 %v312
        %v543 = vunpack.c.l.b16 %v313
        %v544 = vunpack.c.l.b16 %v314
        %v545 = vunpack.c.l.b16 %v315
        %v546 = vunpack.c.l.b16 %v316
        %v547 = vunpack.c.l.b16 %v317
        %v548 = vunpack.c.l.b16 %v318
        %v549 = vunpack.c.l.b16 %v319
        %v550 = vunpack.c.l.b16 %v320
        %v551 = vunpack.c.l.b16 %v321
        %v552 = vunpack.c.l.b16 %v322
        %v553 = vunpack.c.l.b16 %v323
        %v554 = vunpack.c.l.b16 %v324
        %v555 = vunpack.c.l.b16 %v325
        %v556 = vunpack.c.l.b16 %v326
        %v557 = vunpack.c.l.b16 %v327
        %v558 = vunpack.c.l.b16 %v328
        %v559 = vpack.c.b16 %v464, %v463
        %v560 = vpack.c.b16 %v466, %v465
        %v561 = vpack.c.b16 %v468, %v467
        %v562 = vpack.c.b16 %v470, %v469
        %v563 = vpack.c.b16 %v472, %v471
        %v564 = vpack.c.b16 %v474, %v473
        %v565 = vpack.c.b16 %v476, %v475
        %v566 = vpack.c.b16 %v478, %v477
        %v567 = vpack.c.b16 %v480, %v479
        %v568 = vpack.c.b16 %v482, %v481
        %v569 = vpack.c.b16 %v484, %v483
        %v570 = vpack.c.b16 %v486, %v485
        %v571 = vpack.c.b16 %v488, %v487
        %v572 = vpack.c.b16 %v490, %v489
        %v573 = vpack.c.b16 %v492, %v491
        %v574 = vpack.c.b16 %v494, %v493
        %v575 = vpack.c.b16 %v496, %v495
        %v576 = vpack.c.b16 %v498, %v497
        %v577 = vpack.c.b16 %v500, %v499
        %v578 = vpack.c.b16 %v502, %v501
        %v579 = vpack.c.b16 %v504, %v503
        %v580 = vpack.c.b16 %v506, %v505
        %v581 = vpack.c.b16 %v508, %v507
        %v582 = vpack.c.b16 %v510, %v509
        %v583 = vpack.c.b16 %v512, %v511
        %v584 = vpack.c.b16 %v514, %v513
        %v585 = vpack.c.b16 %v516, %v515
        %v586 = vpack.c.b16 %v518, %v517
        %v587 = vpack.c.b16 %v520, %v519
        %v588 = vpack.c.b16 %v522, %v521
        %v589 = vpack.c.b16 %v524, %v523
        %v590 = vpack.c.b16 %v526, %v525
        %v591 = vpack.c.b16 %v528, %v527
        %v592 = vpack.c.b16 %v530, %v529
        %v593 = vpack.c.b16 %v532, %v531
        %v594 = vpack.c.b16 %v534, %v533
        %v595 = vpack.c.b16 %v536, %v535
        %v596 = vpack.c.b16 %v538, %v537
        %v597 = vpack.c.b16 %v540, %v539
        %v598 = vpack.c.b16 %v542, %v541
        %v599 = vpack.c.b16 %v544, %v543
        %v600 = vpack.c.b16 %v546, %v545
        %v601 = vpack.c.b16 %v548, %v547
        %v602 = vpack.c.b16 %v550, %v549
        %v603 = vpack.c.b16 %v552, %v551
        %v604 = vpack.c.b16 %v554, %v553
        %v605 = vpack.c.b16 %v556, %v555
        %v606 = vpack.c.b16 %v558, %v557
        %655 = vmatpush.bf16.msra.mxu0 %v566
        %656 = vmatpush.bf16.msra.mxu0 %v565
        %657 = vmatpush.bf16.msra.mxu0 %v564
        %658 = vmatpush.bf16.msra.mxu0 %v563
        %659 = vmatpush.bf16.msra.mxu0 %v562
        %660 = vmatpush.bf16.msra.mxu0 %v561
        %661 = vmatpush.bf16.msra.mxu0 %v560
        %662 = vmatpush.bf16.msra.mxu0 %v559
        %663 = vmatmul.bf16.gmra.mxu0 %v358
        %v664 = vpop.f32.mrf.mxu0
        %v665 = vadd.f32 %v365, %v664
        %v666 = vpop.f32.mrf.mxu0
        %667 = vdwg.mxu0
        %668 = vmatpush.bf16.msra.mxu0 %v574
        %669 = vmatpush.bf16.msra.mxu0 %v573
        %670 = vmatpush.bf16.msra.mxu0 %v572
        %671 = vmatpush.bf16.msra.mxu0 %v571
        %672 = vmatpush.bf16.msra.mxu0 %v570
        %673 = vmatpush.bf16.msra.mxu0 %v569
        %674 = vmatpush.bf16.msra.mxu0 %v568
        %675 = vmatpush.bf16.msra.mxu0 %v567
        %676 = vmatmul.bf16.gmra.mxu0 %v359
        %v677 = vpop.f32.mrf.mxu0
        %v678 = vadd.f32 %v665, %v677
        %v679 = vpop.f32.mrf.mxu0
        %680 = vdwg.mxu0
        %681 = vmatpush.bf16.msra.mxu0 %v582
        %682 = vmatpush.bf16.msra.mxu0 %v581
        %683 = vmatpush.bf16.msra.mxu0 %v580
        %684 = vmatpush.bf16.msra.mxu0 %v579
        %685 = vmatpush.bf16.msra.mxu0 %v578
        %686 = vmatpush.bf16.msra.mxu0 %v577
        %687 = vmatpush.bf16.msra.mxu0 %v576
        %688 = vmatpush.bf16.msra.mxu0 %v575
        %689 = vmatmul.bf16.gmra.mxu0 %v360
        %v690 = vpop.f32.mrf.mxu0
        %v691 = vadd.f32 %v678, %v690
        %v692 = vpop.f32.mrf.mxu0
        %693 = vdwg.mxu0
        %694 = vmatpush.bf16.msra.mxu0 %v590
        %695 = vmatpush.bf16.msra.mxu0 %v589
        %696 = vmatpush.bf16.msra.mxu0 %v588
        %697 = vmatpush.bf16.msra.mxu0 %v587
        %698 = vmatpush.bf16.msra.mxu0 %v586
        %699 = vmatpush.bf16.msra.mxu0 %v585
        %700 = vmatpush.bf16.msra.mxu0 %v584
        %701 = vmatpush.bf16.msra.mxu0 %v583
        %702 = vmatmul.bf16.gmra.mxu0 %v361
        %v703 = vpop.f32.mrf.mxu0
        %v704 = vadd.f32 %v691, %v703
        %v705 = vpop.f32.mrf.mxu0
        %706 = vdwg.mxu0
        %707 = vmatpush.bf16.msra.mxu0 %v598
        %708 = vmatpush.bf16.msra.mxu0 %v597
        %709 = vmatpush.bf16.msra.mxu0 %v596
        %710 = vmatpush.bf16.msra.mxu0 %v595
        %711 = vmatpush.bf16.msra.mxu0 %v594
        %712 = vmatpush.bf16.msra.mxu0 %v593
        %713 = vmatpush.bf16.msra.mxu0 %v592
        %714 = vmatpush.bf16.msra.mxu0 %v591
        %715 = vmatmul.bf16.gmra.mxu0 %v362
        %v716 = vpop.f32.mrf.mxu0
        %v717 = vadd.f32 %v704, %v716
        %v718 = vpop.f32.mrf.mxu0
        %719 = vdwg.mxu0
        %720 = vmatpush.bf16.msra.mxu0 %v606
        %721 = vmatpush.bf16.msra.mxu0 %v605
        %722 = vmatpush.bf16.msra.mxu0 %v604
        %723 = vmatpush.bf16.msra.mxu0 %v603
        %724 = vmatpush.bf16.msra.mxu0 %v602
        %725 = vmatpush.bf16.msra.mxu0 %v601
        %726 = vmatpush.bf16.msra.mxu0 %v600
        %727 = vmatpush.bf16.msra.mxu0 %v599
        %728 = vmatmul.bf16.gmra.mxu0 %v363
        %v729 = vpop.f32.mrf.mxu0
        %v730 = vadd.f32 %v717, %v729
        %v731 = vpop.f32.mrf.mxu0
        %732 = vdwg.mxu0
        %v733 = vadd.f32 %v730, %v333
        %734 = vst [vmem:[%s232] sm:$0x1] %v334
        %735 = vst [vmem:[%s232 + $0x1] sm:$0xf] %v733
        %p736 = scmp.lt.s32.totalorder %s19, 1
        %s737 = scalar_select %p736, %s19, 1
        %s738 = smul.addr %s737, 8
        %s739 = scalar_lea.vmem %s4, %s738
        // Predicated region
        $region45: #{tpu_custom_call.1} parent=35 // pred_check
          %p740 = pneg %p126
        $region46: #{tpu_custom_call.1} parent=35 // pred_check_branch
          %742 = sbr.rel (%p740) target = $region48
        $region47: #{tpu_custom_call.1} parent=35 // pred_region
          _
        $region48: #{tpu_custom_call.1} parent=35 // pred_fallthru
          _
      $region36: #{tpu_custom_call.1} parent=5 // pred_fallthru
        _
      %p743 = scmp.le.s32.totalorder 2, %s14
      // Predicated region
      $region49: #{tpu_custom_call.1} parent=5 // pred_check
        %p744 = pneg %p743
      $region50: #{tpu_custom_call.1} parent=5 // pred_check_branch
        %746 = sbr.rel (%p744) target = $region52
      $region51: #{tpu_custom_call.1} parent=5 // pred_region
        %s747 = ssub.s32 %s14, 2
        // Predicated region
        $region53: #{tpu_custom_call.1} parent=51 // pred_check
          %p748 = pneg %p132
        $region54: #{tpu_custom_call.1} parent=51 // pred_check_branch
          %750 = sbr.rel (%p748) target = $region56
        $region55: #{tpu_custom_call.1} parent=51 // pred_region
          %p751 = scmp.lt.s32.totalorder %s20, 1
          %s752 = scalar_select %p751, %s20, 1
          %s753 = smul.addr %s752, 8
          %s754 = scalar_lea.vmem %s4, %s753
        $region56: #{tpu_custom_call.1} parent=51 // pred_fallthru
          _
      $region52: #{tpu_custom_call.1} parent=5 // pred_fallthru
        _
    $region6: #{tpu_custom_call.1} parent=1 // loop_footer
      %s18 = sadd.s32 1, %s14
    $region7: #{tpu_custom_call.1} parent=1 // loop_footer_branch
      %13 = sbr.rel target = $region3
    $region8: #{tpu_custom_call.1} parent=1 // loop_exit
      _
    %755 = vsyncpa [#allocation3], 1
    %s756 = scalar_lea.sflag [#allocation3], 1
    %757 = vsyncpa %s756, 1
    %758 = vsyncpa [#allocation5], 1

// kernel: tpu_custom_call.1
$region0: #{tpu_custom_call.1}
  #allocation0 [shape = 'u32[]', space=smem, size = 0x4, offset = 0x4, fixed_abs, tag = 'smem constant byte address 0x4 - core index']
  #allocation1 [shape = 'u32[72,128]{1,0:T(1,128)}', space=vmem, size = 0x9000, scoped, tag = 'internal scratch']
  %s0 = inlined_call_operand.hbm [shape: f32[2,4,768], index: 0, kind: input, shape index: {}]
  %s1 = inlined_call_operand.hbm [shape: bf16[768,128], index: 1, kind: input, shape index: {}]
  %s2 = inlined_call_operand.vmem [shape: f32[1,128], index: 2, kind: input, shape index: {}]
  %s3 = inlined_call_operand.vmem [shape: f32[1,128], index: 3, kind: input, shape index: {}]
  %s4 = inlined_call_operand.hbm [shape: f32[2,4,128], index: 4, kind: output, shape index: {}]
  %s5 = sld [smem:[#allocation0]]
  $region57: #{tpu_custom_call.1} parent=0
    _
  %s7 = ssub.s32 1, %s5
  %s8 = scalar_select 0, %s7, %s5
  $region1: #{tpu_custom_call.1} parent=0
    #allocation2 [shape = 'u8[24576]{0}', space=vmem, size = 0x6000, scoped, tag = 'input window, operand 0']
    #allocation3 [shape = 's32[2]{0}', space=sflag, size = 0x8, scoped, tag = 'scoped memory for tpu_custom_call.1']
    #allocation4 [shape = 's32[2]{0}', space=sflag, size = 0x8, scoped, tag = 'scoped memory for tpu_custom_call.1']
    #allocation5 [shape = 'u8[196608]{0}', space=vmem, size = 0x30000, scoped, tag = 'input window, operand 1, single buffered']
    #allocation6 [shape = 's32[1]{0}', space=sflag, size = 0x4, scoped, tag = 'scoped memory for tpu_custom_call.1']
    #allocation7 [shape = 'u8[4096]{0}', space=vmem, size = 0x1000, scoped, tag = 'output window, operand 0']
    %9 = vsyncpa [#allocation3], 0
    %s10 = scalar_lea.sflag [#allocation3], 1
    %11 = vsyncpa %s10, 0
    %12 = vsyncpa [#allocation6], 0
    %13 = vsyncpa [#allocation4], 0
    %s14 = scalar_lea.sflag [#allocation4], 1
    %15 = vsyncpa %s14, 0
    loop: start=0, step=1, limit=4
    $region2: #{tpu_custom_call.1} parent=1 // loop_pre_header
      _
    $region3: #{tpu_custom_call.1} parent=1 // loop_header
      %s17 = sphi 0, %s21
      %p18 = scmp.ge.s32.totalorder %s17, 4
      %s27 = sphi 0, %s29
      %s30 = sphi 0, %s27
      %s31 = sphi 0, %s30
      %s47 = sphi 0, %s31
      %s51 = sphi 0, %s51
      %s53 = sphi 0, %s51
      %s54 = sphi 0, %s53
      %s68 = sphi 0, %s54
      %s72 = sphi 0, %s72
      %s74 = sphi 0, %s72
      %s75 = sphi 0, %s74
      %s89 = sphi 0, %s75
      %s93 = sphi 0, %s93
      %s95 = sphi 0, %s93
      %s96 = sphi 0, %s95
      %s110 = sphi 0, %s96
      %s116 = sphi 0, %s118
      %s119 = sphi 0, %s116
      %s120 = sphi 0, %s119
      %s136 = sphi 0, %s120
    $region4: #{tpu_custom_call.1} parent=1 // loop_header_branch
      %20 = sbr.rel (%p18) target = $region8
    $region5: #{tpu_custom_call.1} parent=1 // loop_body
      %s22 = ssub.s32 %s17, 1
      %s23 = ssub.s32 %s17, 2
      %s24 = sadd.s32 %s17, 1
      %s25 = ssub.s32 %s17, %s24
      %p26 = scmp.eq.s32.totalorder %s25, 0
      %s28 = sadd.s32 %s27, 1
      %s29 = scalar_select %p26, %s27, %s28
      %p32 = pneg %p26
      %p33 = scmp.eq.s32.totalorder %s17, 1
      %p34 = por %p32, %p33
      %p35 = scmp.ne.s32.totalorder %s27, %s30
      %p36 = scmp.eq.s32.totalorder %s17, 0
      %p37 = por %p35, %p36
      %p38 = scmp.ne.s32.totalorder %s27, %s30
      %p39 = scmp.eq.s32.totalorder %s22, 1
      %p40 = por %p38, %p39
      %p41 = scmp.ne.s32.totalorder %s30, %s31
      %p42 = scmp.eq.s32.totalorder %s22, 0
      %p43 = por %p41, %p42
      %p44 = scmp.ne.s32.totalorder %s30, %s31
      %p45 = scmp.eq.s32.totalorder %s23, 1
      %p46 = por %p44, %p45
      %p48 = scmp.ne.s32.totalorder %s31, %s47
      %p49 = scmp.eq.s32.totalorder %s23, 0
      %p50 = por %p48, %p49
      %s52 = sadd.s32 %s51, 1
      %p55 = scmp.eq.s32.totalorder %s17, 1
      %p56 = scmp.ne.s32.totalorder %s51, %s53
      %p57 = scmp.eq.s32.totalorder %s17, 0
      %p58 = por %p56, %p57
      %p59 = scmp.ne.s32.totalorder %s51, %s53
      %p60 = scmp.eq.s32.totalorder %s22, 1
      %p61 = por %p59, %p60
      %p62 = scmp.ne.s32.totalorder %s53, %s54
      %p63 = scmp.eq.s32.totalorder %s22, 0
      %p64 = por %p62, %p63
      %p65 = scmp.ne.s32.totalorder %s53, %s54
      %p66 = scmp.eq.s32.totalorder %s23, 1
      %p67 = por %p65, %p66
      %p69 = scmp.ne.s32.totalorder %s54, %s68
      %p70 = scmp.eq.s32.totalorder %s23, 0
      %p71 = por %p69, %p70
      %s73 = sadd.s32 %s72, 1
      %p76 = scmp.eq.s32.totalorder %s17, 1
      %p77 = scmp.ne.s32.totalorder %s72, %s74
      %p78 = scmp.eq.s32.totalorder %s17, 0
      %p79 = por %p77, %p78
      %p80 = scmp.ne.s32.totalorder %s72, %s74
      %p81 = scmp.eq.s32.totalorder %s22, 1
      %p82 = por %p80, %p81
      %p83 = scmp.ne.s32.totalorder %s74, %s75
      %p84 = scmp.eq.s32.totalorder %s22, 0
      %p85 = por %p83, %p84
      %p86 = scmp.ne.s32.totalorder %s74, %s75
      %p87 = scmp.eq.s32.totalorder %s23, 1
      %p88 = por %p86, %p87
      %p90 = scmp.ne.s32.totalorder %s75, %s89
      %p91 = scmp.eq.s32.totalorder %s23, 0
      %p92 = por %p90, %p91
      %s94 = sadd.s32 %s93, 1
      %p97 = scmp.eq.s32.totalorder %s17, 1
      %p98 = scmp.ne.s32.totalorder %s93, %s95
      %p99 = scmp.eq.s32.totalorder %s17, 0
      %p100 = por %p98, %p99
      %p101 = scmp.ne.s32.totalorder %s93, %s95
      %p102 = scmp.eq.s32.totalorder %s22, 1
      %p103 = por %p101, %p102
      %p104 = scmp.ne.s32.totalorder %s95, %s96
      %p105 = scmp.eq.s32.totalorder %s22, 0
      %p106 = por %p104, %p105
      %p107 = scmp.ne.s32.totalorder %s95, %s96
      %p108 = scmp.eq.s32.totalorder %s23, 1
      %p109 = por %p107, %p108
      %p111 = scmp.ne.s32.totalorder %s96, %s110
      %p112 = scmp.eq.s32.totalorder %s23, 0
      %p113 = por %p111, %p112
      %s114 = ssub.s32 %s17, %s24
      %p115 = scmp.eq.s32.totalorder %s114, 0
      %s117 = sadd.s32 %s116, 1
      %s118 = scalar_select %p115, %s116, %s117
      %p121 = pneg %p115
      %p122 = scmp.eq.s32.totalorder %s17, 1
      %p123 = por %p121, %p122
      %p124 = scmp.ne.s32.totalorder %s116, %s119
      %p125 = scmp.eq.s32.totalorder %s17, 0
      %p126 = por %p124, %p125
      %p127 = scmp.ne.s32.totalorder %s116, %s119
      %p128 = scmp.eq.s32.totalorder %s22, 1
      %p129 = por %p127, %p128
      %p130 = scmp.ne.s32.totalorder %s119, %s120
      %p131 = scmp.eq.s32.totalorder %s22, 0
      %p132 = por %p130, %p131
      %p133 = scmp.ne.s32.totalorder %s119, %s120
      %p134 = scmp.eq.s32.totalorder %s23, 1
      %p135 = por %p133, %p134
      %p137 = scmp.ne.s32.totalorder %s120, %s136
      %p138 = scmp.eq.s32.totalorder %s23, 0
      %p139 = por %p137, %p138
      %p140 = scmp.le.s32.totalorder 1, %s17
      %p141 = scmp.lt.s32.totalorder %s17, 3
      %p142 = pnand %p140, %p141
      %p143 = pneg %p142
      // Predicated region
      $region9: #{tpu_custom_call.1} parent=5 // pred_check
        _
      $region10: #{tpu_custom_call.1} parent=5 // pred_check_branch
        %145 = sbr.rel (%p142) target = $region12
      $region11: #{tpu_custom_call.1} parent=5 // pred_region
        %s146 = ssub.s32 %s17, 1
        // Predicated region
        $region13: #{tpu_custom_call.1} parent=11 // pred_check
          %p147 = pneg %p64
        $region14: #{tpu_custom_call.1} parent=11 // pred_check_branch
          %149 = sbr.rel (%p147) target = $region16
        $region15: #{tpu_custom_call.1} parent=11 // pred_region
          %151 = vsyncadd [#allocation6], 0
          %s152 = sshll.u32 %s1, 4
          %s153 = int_to_ptr.hbm [resolvable:$true] %s152
          %s154 = sshll.u32 [#allocation5], 4
          %s155 = int_to_ptr.vmem [resolvable:$true] %s154
          %160 = dma.hbm_to_vmem [thread:$0]  %s153, 6144, %s155, [#allocation6], 64, 64, 4
        $region16: #{tpu_custom_call.1} parent=11 // pred_fallthru
          _
        // Predicated region
        $region17: #{tpu_custom_call.1} parent=11 // pred_check
          %p161 = pneg %p85
        $region18: #{tpu_custom_call.1} parent=11 // pred_check_branch
          %163 = sbr.rel (%p161) target = $region20
        $region19: #{tpu_custom_call.1} parent=11 // pred_region
          _
        $region20: #{tpu_custom_call.1} parent=11 // pred_fallthru
          _
        // Predicated region
        $region21: #{tpu_custom_call.1} parent=11 // pred_check
          %p164 = pneg %p106
        $region22: #{tpu_custom_call.1} parent=11 // pred_check_branch
          %166 = sbr.rel (%p164) target = $region24
        $region23: #{tpu_custom_call.1} parent=11 // pred_region
          _
        $region24: #{tpu_custom_call.1} parent=11 // pred_fallthru
          _
      $region12: #{tpu_custom_call.1} parent=5 // pred_fallthru
        _
      %p167 = scmp.lt.s32.totalorder %s17, 2
      // Predicated region
      $region25: #{tpu_custom_call.1} parent=5 // pred_check
        %p168 = pneg %p167
      $region26: #{tpu_custom_call.1} parent=5 // pred_check_branch
        %170 = sbr.rel (%p168) target = $region28
      $region27: #{tpu_custom_call.1} parent=5 // pred_region
        // Predicated region
        $region29: #{tpu_custom_call.1} parent=27 // pred_check
          %p171 = pneg %p37
        $region30: #{tpu_custom_call.1} parent=27 // pred_check_branch
          %173 = sbr.rel (%p171) target = $region32
        $region31: #{tpu_custom_call.1} parent=27 // pred_region
          %s174 = sand.u32 %s27, 1
          %s175 = scalar_lea.sflag [#allocation3], %s174
          %s176 = sand.u32 %s27, 1
          %s177 = smul.addr %s176, 24
          %s178 = scalar_lea.vmem [#allocation2], %s177
          %180 = vsyncadd %s175, 0
          %s181 = smul.addr %s17, 6
          %s182 = smul.addr %s181, 4
          %s183 = scalar_lea.hbm %s0, %s182
          %s185 = sshll.u32 %s183, 4
          %s186 = int_to_ptr.hbm [resolvable:$true] %s185
          %s187 = sshll.u32 %s178, 4
          %s188 = int_to_ptr.vmem [resolvable:$true] %s187
          %190 = dma.hbm_to_vmem [thread:$0]  %s186, 384, %s188, %s175
        $region32: #{tpu_custom_call.1} parent=27 // pred_fallthru
          _
      $region28: #{tpu_custom_call.1} parent=5 // pred_fallthru
        _
      %p191 = scmp.le.s32.totalorder 1, %s17
      %p192 = scmp.lt.s32.totalorder %s17, 3
      %p193 = pnand %p191, %p192
      %p194 = pneg %p193
      // Predicated region
      $region33: #{tpu_custom_call.1} parent=5 // pred_check
        _
      $region34: #{tpu_custom_call.1} parent=5 // pred_check_branch
        %196 = sbr.rel (%p193) target = $region36
      $region35: #{tpu_custom_call.1} parent=5 // pred_region
        %s197 = ssub.s32 %s17, 1
        %s198 = sand.u32 %s30, 1
        %s199 = scalar_lea.sflag [#allocation3], %s198
        %s200 = sand.u32 %s30, 1
        %s201 = smul.addr %s200, 24
        %s202 = scalar_lea.vmem [#allocation2], %s201
        // Predicated region
        $region37: #{tpu_custom_call.1} parent=35 // pred_check
          %p203 = pneg %p43
        $region38: #{tpu_custom_call.1} parent=35 // pred_check_branch
          %205 = sbr.rel (%p203) target = $region40
        $region39: #{tpu_custom_call.1} parent=35 // pred_region
          %207 = dma.done %s199, 384
        $region40: #{tpu_custom_call.1} parent=35 // pred_fallthru
          _
        // Predicated region
        $region41: #{tpu_custom_call.1} parent=35 // pred_check
          %p208 = pneg %p64
        $region42: #{tpu_custom_call.1} parent=35 // pred_check_branch
          %210 = sbr.rel (%p208) target = $region44
        $region43: #{tpu_custom_call.1} parent=35 // pred_region
          %212 = dma.done [#allocation6], 6144
        $region44: #{tpu_custom_call.1} parent=35 // pred_fallthru
          _
        %s213 = sand.u32 %s30, 1
        %s214 = scalar_lea.sflag [#allocation3], %s213
        %s215 = sand.u32 %s30, 1
        %s216 = smul.addr %s215, 24
        %s217 = scalar_lea.vmem [#allocation2], %s216
        %p218 = pneg %p43
        %p219 = pneg %p40
        %p220 = pneg %p64
        %p221 = pneg %p61
        %p222 = pneg %p85
        %p223 = pneg %p82
        %p224 = pneg %p106
        %p225 = pneg %p103
        %p226 = pneg %p132
        %p227 = pneg %p129
        %s228 = sand.u32 %s119, 1
        %s229 = scalar_lea.sflag [#allocation4], %s228
        %s230 = sand.u32 %s119, 1
        %s231 = smul.addr %s230, 4
        %s232 = scalar_lea.vmem [#allocation7], %s231
        %v233 = vld [vmem:[#allocation5] sm:$0xf]
        %v234 = vld [vmem:[#allocation5 + $0x4] sm:$0xf]
        %v235 = vld [vmem:[#allocation5 + $0x8] sm:$0xf]
        %v236 = vld [vmem:[#allocation5 + $0xc] sm:$0xf]
        %v237 = vld [vmem:[#allocation5 + $0x10] sm:$0xf]
        %v238 = vld [vmem:[#allocation5 + $0x14] sm:$0xf]
        %v239 = vld [vmem:[#allocation5 + $0x18] sm:$0xf]
        %v240 = vld [vmem:[#allocation5 + $0x1c] sm:$0xf]
        %v241 = vld [vmem:[#allocation5 + $0x20] sm:$0xf]
        %v242 = vld [vmem:[#allocation5 + $0x24] sm:$0xf]
        %v243 = vld [vmem:[#allocation5 + $0x28] sm:$0xf]
        %v244 = vld [vmem:[#allocation5 + $0x2c] sm:$0xf]
        %v245 = vld [vmem:[#allocation5 + $0x30] sm:$0xf]
        %v246 = vld [vmem:[#allocation5 + $0x34] sm:$0xf]
        %v247 = vld [vmem:[#allocation5 + $0x38] sm:$0xf]
        %v248 = vld [vmem:[#allocation5 + $0x3c] sm:$0xf]
        %v249 = vld [vmem:[#allocation5 + $0x40] sm:$0xf]
        %v250 = vld [vmem:[#allocation5 + $0x44] sm:$0xf]
        %v251 = vld [vmem:[#allocation5 + $0x48] sm:$0xf]
        %v252 = vld [vmem:[#allocation5 + $0x4c] sm:$0xf]
        %v253 = vld [vmem:[#allocation5 + $0x50] sm:$0xf]
        %v254 = vld [vmem:[#allocation5 + $0x54] sm:$0xf]
        %v255 = vld [vmem:[#allocation5 + $0x58] sm:$0xf]
        %v256 = vld [vmem:[#allocation5 + $0x5c] sm:$0xf]
        %v257 = vld [vmem:[#allocation5 + $0x60] sm:$0xf]
        %v258 = vld [vmem:[#allocation5 + $0x64] sm:$0xf]
        %v259 = vld [vmem:[#allocation5 + $0x68] sm:$0xf]
        %v260 = vld [vmem:[#allocation5 + $0x6c] sm:$0xf]
        %v261 = vld [vmem:[#allocation5 + $0x70] sm:$0xf]
        %v262 = vld [vmem:[#allocation5 + $0x74] sm:$0xf]
        %v263 = vld [vmem:[#allocation5 + $0x78] sm:$0xf]
        %v264 = vld [vmem:[#allocation5 + $0x7c] sm:$0xf]
        %v265 = vld [vmem:[#allocation5 + $0x80] sm:$0xf]
        %v266 = vld [vmem:[#allocation5 + $0x84] sm:$0xf]
        %v267 = vld [vmem:[#allocation5 + $0x88] sm:$0xf]
        %v268 = vld [vmem:[#allocation5 + $0x8c] sm:$0xf]
        %v269 = vld [vmem:[#allocation5 + $0x90] sm:$0xf]
        %v270 = vld [vmem:[#allocation5 + $0x94] sm:$0xf]
        %v271 = vld [vmem:[#allocation5 + $0x98] sm:$0xf]
        %v272 = vld [vmem:[#allocation5 + $0x9c] sm:$0xf]
        %v273 = vld [vmem:[#allocation5 + $0xa0] sm:$0xf]
        %v274 = vld [vmem:[#allocation5 + $0xa4] sm:$0xf]
        %v275 = vld [vmem:[#allocation5 + $0xa8] sm:$0xf]
        %v276 = vld [vmem:[#allocation5 + $0xac] sm:$0xf]
        %v277 = vld [vmem:[#allocation5 + $0xb0] sm:$0xf]
        %v278 = vld [vmem:[#allocation5 + $0xb4] sm:$0xf]
        %v279 = vld [vmem:[#allocation5 + $0xb8] sm:$0xf]
        %v280 = vld [vmem:[#allocation5 + $0xbc] sm:$0xf]
        %v281 = vld [vmem:[#allocation5 + $0xc0] sm:$0xf]
        %v282 = vld [vmem:[#allocation5 + $0xc4] sm:$0xf]
        %v283 = vld [vmem:[#allocation5 + $0xc8] sm:$0xf]
        %v284 = vld [vmem:[#allocation5 + $0xcc] sm:$0xf]
        %v285 = vld [vmem:[#allocation5 + $0xd0] sm:$0xf]
        %v286 = vld [vmem:[#allocation5 + $0xd4] sm:$0xf]
        %v287 = vld [vmem:[#allocation5 + $0xd8] sm:$0xf]
        %v288 = vld [vmem:[#allocation5 + $0xdc] sm:$0xf]
        %v289 = vld [vmem:[#allocation5 + $0xe0] sm:$0xf]
        %v290 = vld [vmem:[#allocation5 + $0xe4] sm:$0xf]
        %v291 = vld [vmem:[#allocation5 + $0xe8] sm:$0xf]
        %v292 = vld [vmem:[#allocation5 + $0xec] sm:$0xf]
        %v293 = vld [vmem:[#allocation5 + $0xf0] sm:$0xf]
        %v294 = vld [vmem:[#allocation5 + $0xf4] sm:$0xf]
        %v295 = vld [vmem:[#allocation5 + $0xf8] sm:$0xf]
        %v296 = vld [vmem:[#allocation5 + $0xfc] sm:$0xf]
        %v297 = vld [vmem:[#allocation5 + $0x100] sm:$0xf]
        %v298 = vld [vmem:[#allocation5 + $0x104] sm:$0xf]
        %v299 = vld [vmem:[#allocation5 + $0x108] sm:$0xf]
        %v300 = vld [vmem:[#allocation5 + $0x10c] sm:$0xf]
        %v301 = vld [vmem:[#allocation5 + $0x110] sm:$0xf]
        %v302 = vld [vmem:[#allocation5 + $0x114] sm:$0xf]
        %v303 = vld [vmem:[#allocation5 + $0x118] sm:$0xf]
        %v304 = vld [vmem:[#allocation5 + $0x11c] sm:$0xf]
        %v305 = vld [vmem:[#allocation5 + $0x120] sm:$0xf]
        %v306 = vld [vmem:[#allocation5 + $0x124] sm:$0xf]
        %v307 = vld [vmem:[#allocation5 + $0x128] sm:$0xf]
        %v308 = vld [vmem:[#allocation5 + $0x12c] sm:$0xf]
        %v309 = vld [vmem:[#allocation5 + $0x130] sm:$0xf]
        %v310 = vld [vmem:[#allocation5 + $0x134] sm:$0xf]
        %v311 = vld [vmem:[#allocation5 + $0x138] sm:$0xf]
        %v312 = vld [vmem:[#allocation5 + $0x13c] sm:$0xf]
        %v313 = vld [vmem:[#allocation5 + $0x140] sm:$0xf]
        %v314 = vld [vmem:[#allocation5 + $0x144] sm:$0xf]
        %v315 = vld [vmem:[#allocation5 + $0x148] sm:$0xf]
        %v316 = vld [vmem:[#allocation5 + $0x14c] sm:$0xf]
        %v317 = vld [vmem:[#allocation5 + $0x150] sm:$0xf]
        %v318 = vld [vmem:[#allocation5 + $0x154] sm:$0xf]
        %v319 = vld [vmem:[#allocation5 + $0x158] sm:$0xf]
        %v320 = vld [vmem:[#allocation5 + $0x15c] sm:$0xf]
        %v321 = vld [vmem:[#allocation5 + $0x160] sm:$0xf]
        %v322 = vld [vmem:[#allocation5 + $0x164] sm:$0xf]
        %v323 = vld [vmem:[#allocation5 + $0x168] sm:$0xf]
        %v324 = vld [vmem:[#allocation5 + $0x16c] sm:$0xf]
        %v325 = vld [vmem:[#allocation5 + $0x170] sm:$0xf]
        %v326 = vld [vmem:[#allocation5 + $0x174] sm:$0xf]
        %v327 = vld [vmem:[#allocation5 + $0x178] sm:$0xf]
        %v328 = vld [vmem:[#allocation5 + $0x17c] sm:$0xf]
        %v329 = vld [vmem:[%s2] sm:$0x1]
        %v330 = vlaneseq
        %v331 = vshrl.u32 %v330, 7
        %v332 = vadd.s32 %v331, 1
        %v333 = vcvt.s32.f32 %v332
        %v334 = vld [vmem:[%s202] sm:$0xff]
        %v335 = vld [vmem:[%s202 + $0x8] sm:$0xff]
        %v336 = vld [vmem:[%s202 + $0x10] sm:$0xff]
        %340 = vst [vmem:[#allocation1] ss:$2 sm:$0xff] %v334
        %s341 = scalar_lea.vmem [#allocation1], 16
        %342 = vst [vmem:[%s341] ss:$2 sm:$0xff] %v335
        %s343 = scalar_lea.vmem [#allocation1], 32
        %344 = vst [vmem:[%s343] ss:$2 sm:$0xff] %v336
        %v345 = vld.sshfl [vmem:[#allocation1] sm:$0xff pattern:$0x75316420]
        %v346 = vld.sshfl [vmem:[#allocation1 + $0x8] sm:$0xff pattern:$0x75316420]
        %v347 = vld.sshfl [vmem:[#allocation1 + $0x10] sm:$0xff pattern:$0x75316420]
        %v348 = vld.sshfl [vmem:[#allocation1 + $0x18] sm:$0xff pattern:$0x75316420]
        %v349 = vld.sshfl [vmem:[#allocation1 + $0x20] sm:$0xff pattern:$0x75316420]
        %v350 = vld.sshfl [vmem:[#allocation1 + $0x28] sm:$0xff pattern:$0x75316420]
        %v357 = vpack.c.bf16 %v345, %v345
        %v358 = vpack.c.bf16 %v346, %v346
        %v359 = vpack.c.bf16 %v347, %v347
        %v360 = vpack.c.bf16 %v348, %v348
        %v361 = vpack.c.bf16 %v349, %v349
        %v362 = vpack.c.bf16 %v350, %v350
        %v364 = vperm.slane %v329, 0
        %v462 = vunpack.c.l.b16 %v233
        %v463 = vunpack.c.l.b16 %v234
        %v464 = vunpack.c.l.b16 %v235
        %v465 = vunpack.c.l.b16 %v236
        %v466 = vunpack.c.l.b16 %v237
        %v467 = vunpack.c.l.b16 %v238
        %v468 = vunpack.c.l.b16 %v239
        %v469 = vunpack.c.l.b16 %v240
        %v470 = vunpack.c.l.b16 %v241
        %v471 = vunpack.c.l.b16 %v242
        %v472 = vunpack.c.l.b16 %v243
        %v473 = vunpack.c.l.b16 %v244
        %v474 = vunpack.c.l.b16 %v245
        %v475 = vunpack.c.l.b16 %v246
        %v476 = vunpack.c.l.b16 %v247
        %v477 = vunpack.c.l.b16 %v248
        %v478 = vunpack.c.l.b16 %v249
        %v479 = vunpack.c.l.b16 %v250
        %v480 = vunpack.c.l.b16 %v251
        %v481 = vunpack.c.l.b16 %v252
        %v482 = vunpack.c.l.b16 %v253
        %v483 = vunpack.c.l.b16 %v254
        %v484 = vunpack.c.l.b16 %v255
        %v485 = vunpack.c.l.b16 %v256
        %v486 = vunpack.c.l.b16 %v257
        %v487 = vunpack.c.l.b16 %v258
        %v488 = vunpack.c.l.b16 %v259
        %v489 = vunpack.c.l.b16 %v260
        %v490 = vunpack.c.l.b16 %v261
        %v491 = vunpack.c.l.b16 %v262
        %v492 = vunpack.c.l.b16 %v263
        %v493 = vunpack.c.l.b16 %v264
        %v494 = vunpack.c.l.b16 %v265
        %v495 = vunpack.c.l.b16 %v266
        %v496 = vunpack.c.l.b16 %v267
        %v497 = vunpack.c.l.b16 %v268
        %v498 = vunpack.c.l.b16 %v269
        %v499 = vunpack.c.l.b16 %v270
        %v500 = vunpack.c.l.b16 %v271
        %v501 = vunpack.c.l.b16 %v272
        %v502 = vunpack.c.l.b16 %v273
        %v503 = vunpack.c.l.b16 %v274
        %v504 = vunpack.c.l.b16 %v275
        %v505 = vunpack.c.l.b16 %v276
        %v506 = vunpack.c.l.b16 %v277
        %v507 = vunpack.c.l.b16 %v278
        %v508 = vunpack.c.l.b16 %v279
        %v509 = vunpack.c.l.b16 %v280
        %v510 = vunpack.c.l.b16 %v281
        %v511 = vunpack.c.l.b16 %v282
        %v512 = vunpack.c.l.b16 %v283
        %v513 = vunpack.c.l.b16 %v284
        %v514 = vunpack.c.l.b16 %v285
        %v515 = vunpack.c.l.b16 %v286
        %v516 = vunpack.c.l.b16 %v287
        %v517 = vunpack.c.l.b16 %v288
        %v518 = vunpack.c.l.b16 %v289
        %v519 = vunpack.c.l.b16 %v290
        %v520 = vunpack.c.l.b16 %v291
        %v521 = vunpack.c.l.b16 %v292
        %v522 = vunpack.c.l.b16 %v293
        %v523 = vunpack.c.l.b16 %v294
        %v524 = vunpack.c.l.b16 %v295
        %v525 = vunpack.c.l.b16 %v296
        %v526 = vunpack.c.l.b16 %v297
        %v527 = vunpack.c.l.b16 %v298
        %v528 = vunpack.c.l.b16 %v299
        %v529 = vunpack.c.l.b16 %v300
        %v530 = vunpack.c.l.b16 %v301
        %v531 = vunpack.c.l.b16 %v302
        %v532 = vunpack.c.l.b16 %v303
        %v533 = vunpack.c.l.b16 %v304
        %v534 = vunpack.c.l.b16 %v305
        %v535 = vunpack.c.l.b16 %v306
        %v536 = vunpack.c.l.b16 %v307
        %v537 = vunpack.c.l.b16 %v308
        %v538 = vunpack.c.l.b16 %v309
        %v539 = vunpack.c.l.b16 %v310
        %v540 = vunpack.c.l.b16 %v311
        %v541 = vunpack.c.l.b16 %v312
        %v542 = vunpack.c.l.b16 %v313
        %v543 = vunpack.c.l.b16 %v314
        %v544 = vunpack.c.l.b16 %v315
        %v545 = vunpack.c.l.b16 %v316
        %v546 = vunpack.c.l.b16 %v317
        %v547 = vunpack.c.l.b16 %v318
        %v548 = vunpack.c.l.b16 %v319
        %v549 = vunpack.c.l.b16 %v320
        %v550 = vunpack.c.l.b16 %v321
        %v551 = vunpack.c.l.b16 %v322
        %v552 = vunpack.c.l.b16 %v323
        %v553 = vunpack.c.l.b16 %v324
        %v554 = vunpack.c.l.b16 %v325
        %v555 = vunpack.c.l.b16 %v326
        %v556 = vunpack.c.l.b16 %v327
        %v557 = vunpack.c.l.b16 %v328
        %v558 = vpack.c.b16 %v463, %v462
        %v559 = vpack.c.b16 %v465, %v464
        %v560 = vpack.c.b16 %v467, %v466
        %v561 = vpack.c.b16 %v469, %v468
        %v562 = vpack.c.b16 %v471, %v470
        %v563 = vpack.c.b16 %v473, %v472
        %v564 = vpack.c.b16 %v475, %v474
        %v565 = vpack.c.b16 %v477, %v476
        %v566 = vpack.c.b16 %v479, %v478
        %v567 = vpack.c.b16 %v481, %v480
        %v568 = vpack.c.b16 %v483, %v482
        %v569 = vpack.c.b16 %v485, %v484
        %v570 = vpack.c.b16 %v487, %v486
        %v571 = vpack.c.b16 %v489, %v488
        %v572 = vpack.c.b16 %v491, %v490
        %v573 = vpack.c.b16 %v493, %v492
        %v574 = vpack.c.b16 %v495, %v494
        %v575 = vpack.c.b16 %v497, %v496
        %v576 = vpack.c.b16 %v499, %v498
        %v577 = vpack.c.b16 %v501, %v500
        %v578 = vpack.c.b16 %v503, %v502
        %v579 = vpack.c.b16 %v505, %v504
        %v580 = vpack.c.b16 %v507, %v506
        %v581 = vpack.c.b16 %v509, %v508
        %v582 = vpack.c.b16 %v511, %v510
        %v583 = vpack.c.b16 %v513, %v512
        %v584 = vpack.c.b16 %v515, %v514
        %v585 = vpack.c.b16 %v517, %v516
        %v586 = vpack.c.b16 %v519, %v518
        %v587 = vpack.c.b16 %v521, %v520
        %v588 = vpack.c.b16 %v523, %v522
        %v589 = vpack.c.b16 %v525, %v524
        %v590 = vpack.c.b16 %v527, %v526
        %v591 = vpack.c.b16 %v529, %v528
        %v592 = vpack.c.b16 %v531, %v530
        %v593 = vpack.c.b16 %v533, %v532
        %v594 = vpack.c.b16 %v535, %v534
        %v595 = vpack.c.b16 %v537, %v536
        %v596 = vpack.c.b16 %v539, %v538
        %v597 = vpack.c.b16 %v541, %v540
        %v598 = vpack.c.b16 %v543, %v542
        %v599 = vpack.c.b16 %v545, %v544
        %v600 = vpack.c.b16 %v547, %v546
        %v601 = vpack.c.b16 %v549, %v548
        %v602 = vpack.c.b16 %v551, %v550
        %v603 = vpack.c.b16 %v553, %v552
        %v604 = vpack.c.b16 %v555, %v554
        %v605 = vpack.c.b16 %v557, %v556
        %654 = vmatpush.bf16.msra.mxu0 %v565
        %655 = vmatpush.bf16.msra.mxu0 %v564
        %656 = vmatpush.bf16.msra.mxu0 %v563
        %657 = vmatpush.bf16.msra.mxu0 %v562
        %658 = vmatpush.bf16.msra.mxu0 %v561
        %659 = vmatpush.bf16.msra.mxu0 %v560
        %660 = vmatpush.bf16.msra.mxu0 %v559
        %661 = vmatpush.bf16.msra.mxu0 %v558
        %662 = vmatmul.bf16.gmra.mxu0 %v357
        %v663 = vpop.f32.mrf.mxu0
        %v664 = vadd.f32 %v364, %v663
        %v665 = vpop.f32.mrf.mxu0
        %666 = vdwg.mxu0
        %667 = vmatpush.bf16.msra.mxu0 %v573
        %668 = vmatpush.bf16.msra.mxu0 %v572
        %669 = vmatpush.bf16.msra.mxu0 %v571
        %670 = vmatpush.bf16.msra.mxu0 %v570
        %671 = vmatpush.bf16.msra.mxu0 %v569
        %672 = vmatpush.bf16.msra.mxu0 %v568
        %673 = vmatpush.bf16.msra.mxu0 %v567
        %674 = vmatpush.bf16.msra.mxu0 %v566
        %675 = vmatmul.bf16.gmra.mxu0 %v358
        %v676 = vpop.f32.mrf.mxu0
        %v677 = vadd.f32 %v664, %v676
        %v678 = vpop.f32.mrf.mxu0
        %679 = vdwg.mxu0
        %680 = vmatpush.bf16.msra.mxu0 %v581
        %681 = vmatpush.bf16.msra.mxu0 %v580
        %682 = vmatpush.bf16.msra.mxu0 %v579
        %683 = vmatpush.bf16.msra.mxu0 %v578
        %684 = vmatpush.bf16.msra.mxu0 %v577
        %685 = vmatpush.bf16.msra.mxu0 %v576
        %686 = vmatpush.bf16.msra.mxu0 %v575
        %687 = vmatpush.bf16.msra.mxu0 %v574
        %688 = vmatmul.bf16.gmra.mxu0 %v359
        %v689 = vpop.f32.mrf.mxu0
        %v690 = vadd.f32 %v677, %v689
        %v691 = vpop.f32.mrf.mxu0
        %692 = vdwg.mxu0
        %693 = vmatpush.bf16.msra.mxu0 %v589
        %694 = vmatpush.bf16.msra.mxu0 %v588
        %695 = vmatpush.bf16.msra.mxu0 %v587
        %696 = vmatpush.bf16.msra.mxu0 %v586
        %697 = vmatpush.bf16.msra.mxu0 %v585
        %698 = vmatpush.bf16.msra.mxu0 %v584
        %699 = vmatpush.bf16.msra.mxu0 %v583
        %700 = vmatpush.bf16.msra.mxu0 %v582
        %701 = vmatmul.bf16.gmra.mxu0 %v360
        %v702 = vpop.f32.mrf.mxu0
        %v703 = vadd.f32 %v690, %v702
        %v704 = vpop.f32.mrf.mxu0
        %705 = vdwg.mxu0
        %706 = vmatpush.bf16.msra.mxu0 %v597
        %707 = vmatpush.bf16.msra.mxu0 %v596
        %708 = vmatpush.bf16.msra.mxu0 %v595
        %709 = vmatpush.bf16.msra.mxu0 %v594
        %710 = vmatpush.bf16.msra.mxu0 %v593
        %711 = vmatpush.bf16.msra.mxu0 %v592
        %712 = vmatpush.bf16.msra.mxu0 %v591
        %713 = vmatpush.bf16.msra.mxu0 %v590
        %714 = vmatmul.bf16.gmra.mxu0 %v361
        %v715 = vpop.f32.mrf.mxu0
        %v716 = vadd.f32 %v703, %v715
        %v717 = vpop.f32.mrf.mxu0
        %718 = vdwg.mxu0
        %719 = vmatpush.bf16.msra.mxu0 %v605
        %720 = vmatpush.bf16.msra.mxu0 %v604
        %721 = vmatpush.bf16.msra.mxu0 %v603
        %722 = vmatpush.bf16.msra.mxu0 %v602
        %723 = vmatpush.bf16.msra.mxu0 %v601
        %724 = vmatpush.bf16.msra.mxu0 %v600
        %725 = vmatpush.bf16.msra.mxu0 %v599
        %726 = vmatpush.bf16.msra.mxu0 %v598
        %727 = vmatmul.bf16.gmra.mxu0 %v362
        %v728 = vpop.f32.mrf.mxu0
        %v729 = vadd.f32 %v716, %v728
        %v730 = vpop.f32.mrf.mxu0
        %731 = vdwg.mxu0
        %v732 = vadd.f32 %v729, %v333
        %733 = vst [vmem:[%s232] sm:$0xf] %v732
        %s734 = sand.u32 %s119, 1
        %s735 = scalar_lea.sflag [#allocation4], %s734
        %s736 = sand.u32 %s119, 1
        %s737 = smul.addr %s736, 4
        %s738 = scalar_lea.vmem [#allocation7], %s737
        // Predicated region
        $region45: #{tpu_custom_call.1} parent=35 // pred_check
          %p739 = pneg %p129
        $region46: #{tpu_custom_call.1} parent=35 // pred_check_branch
          %741 = sbr.rel (%p739) target = $region48
        $region47: #{tpu_custom_call.1} parent=35 // pred_region
          %743 = vsyncadd %s735, 0
          %s744 = smul.addr %s22, 4
          %s745 = scalar_lea.hbm %s4, %s744
          %s747 = sshll.u32 %s738, 4
          %s748 = int_to_ptr.vmem [resolvable:$true] %s747
          %s749 = sshll.u32 %s745, 4
          %s750 = int_to_ptr.hbm [resolvable:$true] %s749
          %752 = dma.vmem_to_hbm [thread:$0]  %s748, 64, %s750, %s735
        $region48: #{tpu_custom_call.1} parent=35 // pred_fallthru
          _
      $region36: #{tpu_custom_call.1} parent=5 // pred_fallthru
        _
      %p753 = scmp.le.s32.totalorder 2, %s17
      // Predicated region
      $region49: #{tpu_custom_call.1} parent=5 // pred_check
        %p754 = pneg %p753
      $region50: #{tpu_custom_call.1} parent=5 // pred_check_branch
        %756 = sbr.rel (%p754) target = $region52
      $region51: #{tpu_custom_call.1} parent=5 // pred_region
        %s757 = ssub.s32 %s17, 2
        // Predicated region
        $region53: #{tpu_custom_call.1} parent=51 // pred_check
          %p758 = pneg %p135
        $region54: #{tpu_custom_call.1} parent=51 // pred_check_branch
          %760 = sbr.rel (%p758) target = $region56
        $region55: #{tpu_custom_call.1} parent=51 // pred_region
          %s761 = sand.u32 %s120, 1
          %s762 = scalar_lea.sflag [#allocation4], %s761
          %s763 = sand.u32 %s120, 1
          %s764 = smul.addr %s763, 4
          %s765 = scalar_lea.vmem [#allocation7], %s764
          %767 = dma.done %s762, 64
        $region56: #{tpu_custom_call.1} parent=51 // pred_fallthru
          _
      $region52: #{tpu_custom_call.1} parent=5 // pred_fallthru
        _
    $region6: #{tpu_custom_call.1} parent=1 // loop_footer
      %s21 = sadd.s32 1, %s17
    $region7: #{tpu_custom_call.1} parent=1 // loop_footer_branch
      %16 = sbr.rel target = $region3
    $region8: #{tpu_custom_call.1} parent=1 // loop_exit
      _
    %768 = vsyncpa [#allocation3], 1
    %s769 = scalar_lea.sflag [#allocation3], 1
    %770 = vsyncpa %s769, 1
    %771 = vsyncpa [#allocation6], 1
    %772 = vsyncpa [#allocation4], 1
    %s773 = scalar_lea.sflag [#allocation4], 1
    %774 = vsyncpa %s773, 1

// kernel: tpu_custom_call.1
$region0: #{tpu_custom_call.1}
  #allocation0 [shape = 'u32[]', space=smem, size = 0x4, offset = 0x4, fixed_abs, tag = 'smem constant byte address 0x4 - core index']
  #allocation1 [shape = 'u32[72,128]{1,0:T(1,128)}', space=vmem, size = 0x9000, scoped, tag = 'internal scratch']
  %s0 = inlined_call_operand.hbm [shape: f32[2,4,768], index: 0, kind: input, shape index: {}]
  %s1 = inlined_call_operand.hbm [shape: bf16[768,128], index: 1, kind: input, shape index: {}]
  %s2 = inlined_call_operand.vmem [shape: f32[1,128], index: 2, kind: input, shape index: {}]
  %s3 = inlined_call_operand.vmem [shape: f32[1,128], index: 3, kind: input, shape index: {}]
  %s4 = inlined_call_operand.hbm [shape: f32[2,4,128], index: 4, kind: output, shape index: {}]
  %s5 = sld [smem:[#allocation0]]
  $region57: #{tpu_custom_call.1} parent=0
    _
  %s7 = ssub.s32 1, %s5
  %s8 = scalar_select 0, %s7, %s5
  $region1: #{tpu_custom_call.1} parent=0
    #allocation2 [shape = 'u8[24576]{0}', space=vmem, size = 0x6000, scoped, tag = 'input window, operand 0']
    #allocation3 [shape = 's32[2]{0}', space=sflag, size = 0x8, scoped, tag = 'scoped memory for tpu_custom_call.1']
    #allocation4 [shape = 's32[2]{0}', space=sflag, size = 0x8, scoped, tag = 'scoped memory for tpu_custom_call.1']
    #allocation5 [shape = 'u8[196608]{0}', space=vmem, size = 0x30000, scoped, tag = 'input window, operand 1, single buffered']
    #allocation6 [shape = 's32[1]{0}', space=sflag, size = 0x4, scoped, tag = 'scoped memory for tpu_custom_call.1']
    #allocation7 [shape = 'u8[4096]{0}', space=vmem, size = 0x1000, scoped, tag = 'output window, operand 0']
    %9 = vsyncpa [#allocation3], 0
    %s10 = scalar_lea.sflag [#allocation3], 1
    %11 = vsyncpa %s10, 0
    %12 = vsyncpa [#allocation6], 0
    %13 = vsyncpa [#allocation4], 0
    %s14 = scalar_lea.sflag [#allocation4], 1
    %15 = vsyncpa %s14, 0
    loop: start=0, step=1, limit=4
    $region2: #{tpu_custom_call.1} parent=1 // loop_pre_header
      _
    $region3: #{tpu_custom_call.1} parent=1 // loop_header
      %s17 = sphi 0, %s21
      %p18 = scmp.ge.s32.totalorder %s17, 4
      %s27 = sphi 0, %s29
      %s30 = sphi 0, %s27
      %s31 = sphi 0, %s30
      %s47 = sphi 0, %s31
      %s51 = sphi 0, %s51
      %s53 = sphi 0, %s51
      %s54 = sphi 0, %s53
      %s68 = sphi 0, %s54
      %s72 = sphi 0, %s72
      %s74 = sphi 0, %s72
      %s75 = sphi 0, %s74
      %s89 = sphi 0, %s75
      %s93 = sphi 0, %s93
      %s95 = sphi 0, %s93
      %s96 = sphi 0, %s95
      %s110 = sphi 0, %s96
      %s116 = sphi 0, %s118
      %s119 = sphi 0, %s116
      %s120 = sphi 0, %s119
      %s136 = sphi 0, %s120
    $region4: #{tpu_custom_call.1} parent=1 // loop_header_branch
      %20 = sbr.rel (%p18) target = $region8
    $region5: #{tpu_custom_call.1} parent=1 // loop_body
      %s22 = ssub.s32 %s17, 1
      %s23 = ssub.s32 %s17, 2
      %s24 = sadd.s32 %s17, 1
      %s25 = ssub.s32 %s17, %s24
      %p26 = scmp.eq.s32.totalorder %s25, 0
      %s28 = sadd.s32 %s27, 1
      %s29 = scalar_select %p26, %s27, %s28
      %p32 = pneg %p26
      %p33 = scmp.eq.s32.totalorder %s17, 1
      %p34 = por %p32, %p33
      %p35 = scmp.ne.s32.totalorder %s27, %s30
      %p36 = scmp.eq.s32.totalorder %s17, 0
      %p37 = por %p35, %p36
      %p38 = scmp.ne.s32.totalorder %s27, %s30
      %p39 = scmp.eq.s32.totalorder %s22, 1
      %p40 = por %p38, %p39
      %p41 = scmp.ne.s32.totalorder %s30, %s31
      %p42 = scmp.eq.s32.totalorder %s22, 0
      %p43 = por %p41, %p42
      %p44 = scmp.ne.s32.totalorder %s30, %s31
      %p45 = scmp.eq.s32.totalorder %s23, 1
      %p46 = por %p44, %p45
      %p48 = scmp.ne.s32.totalorder %s31, %s47
      %p49 = scmp.eq.s32.totalorder %s23, 0
      %p50 = por %p48, %p49
      %s52 = sadd.s32 %s51, 1
      %p55 = scmp.eq.s32.totalorder %s17, 1
      %p56 = scmp.ne.s32.totalorder %s51, %s53
      %p57 = scmp.eq.s32.totalorder %s17, 0
      %p58 = por %p56, %p57
      %p59 = scmp.ne.s32.totalorder %s51, %s53
      %p60 = scmp.eq.s32.totalorder %s22, 1
      %p61 = por %p59, %p60
      %p62 = scmp.ne.s32.totalorder %s53, %s54
      %p63 = scmp.eq.s32.totalorder %s22, 0
      %p64 = por %p62, %p63
      %p65 = scmp.ne.s32.totalorder %s53, %s54
      %p66 = scmp.eq.s32.totalorder %s23, 1
      %p67 = por %p65, %p66
      %p69 = scmp.ne.s32.totalorder %s54, %s68
      %p70 = scmp.eq.s32.totalorder %s23, 0
      %p71 = por %p69, %p70
      %s73 = sadd.s32 %s72, 1
      %p76 = scmp.eq.s32.totalorder %s17, 1
      %p77 = scmp.ne.s32.totalorder %s72, %s74
      %p78 = scmp.eq.s32.totalorder %s17, 0
      %p79 = por %p77, %p78
      %p80 = scmp.ne.s32.totalorder %s72, %s74
      %p81 = scmp.eq.s32.totalorder %s22, 1
      %p82 = por %p80, %p81
      %p83 = scmp.ne.s32.totalorder %s74, %s75
      %p84 = scmp.eq.s32.totalorder %s22, 0
      %p85 = por %p83, %p84
      %p86 = scmp.ne.s32.totalorder %s74, %s75
      %p87 = scmp.eq.s32.totalorder %s23, 1
      %p88 = por %p86, %p87
      %p90 = scmp.ne.s32.totalorder %s75, %s89
      %p91 = scmp.eq.s32.totalorder %s23, 0
      %p92 = por %p90, %p91
      %s94 = sadd.s32 %s93, 1
      %p97 = scmp.eq.s32.totalorder %s17, 1
      %p98 = scmp.ne.s32.totalorder %s93, %s95
      %p99 = scmp.eq.s32.totalorder %s17, 0
      %p100 = por %p98, %p99
      %p101 = scmp.ne.s32.totalorder %s93, %s95
      %p102 = scmp.eq.s32.totalorder %s22, 1
      %p103 = por %p101, %p102
      %p104 = scmp.ne.s32.totalorder %s95, %s96
      %p105 = scmp.eq.s32.totalorder %s22, 0
      %p106 = por %p104, %p105
      %p107 = scmp.ne.s32.totalorder %s95, %s96
      %p108 = scmp.eq.s32.totalorder %s23, 1
      %p109 = por %p107, %p108
      %p111 = scmp.ne.s32.totalorder %s96, %s110
      %p112 = scmp.eq.s32.totalorder %s23, 0
      %p113 = por %p111, %p112
      %s114 = ssub.s32 %s17, %s24
      %p115 = scmp.eq.s32.totalorder %s114, 0
      %s117 = sadd.s32 %s116, 1
      %s118 = scalar_select %p115, %s116, %s117
      %p121 = pneg %p115
      %p122 = scmp.eq.s32.totalorder %s17, 1
      %p123 = por %p121, %p122
      %p124 = scmp.ne.s32.totalorder %s116, %s119
      %p125 = scmp.eq.s32.totalorder %s17, 0
      %p126 = por %p124, %p125
      %p127 = scmp.ne.s32.totalorder %s116, %s119
      %p128 = scmp.eq.s32.totalorder %s22, 1
      %p129 = por %p127, %p128
      %p130 = scmp.ne.s32.totalorder %s119, %s120
      %p131 = scmp.eq.s32.totalorder %s22, 0
      %p132 = por %p130, %p131
      %p133 = scmp.ne.s32.totalorder %s119, %s120
      %p134 = scmp.eq.s32.totalorder %s23, 1
      %p135 = por %p133, %p134
      %p137 = scmp.ne.s32.totalorder %s120, %s136
      %p138 = scmp.eq.s32.totalorder %s23, 0
      %p139 = por %p137, %p138
      %p140 = scmp.le.s32.totalorder 1, %s17
      %p141 = scmp.lt.s32.totalorder %s17, 3
      %p142 = pnand %p140, %p141
      %p143 = pneg %p142
      // Predicated region
      $region9: #{tpu_custom_call.1} parent=5 // pred_check
        _
      $region10: #{tpu_custom_call.1} parent=5 // pred_check_branch
        %145 = sbr.rel (%p142) target = $region12
      $region11: #{tpu_custom_call.1} parent=5 // pred_region
        %s146 = ssub.s32 %s17, 1
        // Predicated region
        $region13: #{tpu_custom_call.1} parent=11 // pred_check
          %p147 = pneg %p64
        $region14: #{tpu_custom_call.1} parent=11 // pred_check_branch
          %149 = sbr.rel (%p147) target = $region16
        $region15: #{tpu_custom_call.1} parent=11 // pred_region
          %151 = vsyncadd [#allocation6], 0
          %s152 = sshll.u32 %s1, 4
          %s153 = int_to_ptr.hbm [resolvable:$true] %s152
          %s154 = sshll.u32 [#allocation5], 4
          %s155 = int_to_ptr.vmem [resolvable:$true] %s154
          %160 = dma.hbm_to_vmem [thread:$0]  %s153, 6144, %s155, [#allocation6], 64, 64, 4
        $region16: #{tpu_custom_call.1} parent=11 // pred_fallthru
          _
        // Predicated region
        $region17: #{tpu_custom_call.1} parent=11 // pred_check
          %p161 = pneg %p85
        $region18: #{tpu_custom_call.1} parent=11 // pred_check_branch
          %163 = sbr.rel (%p161) target = $region20
        $region19: #{tpu_custom_call.1} parent=11 // pred_region
          _
        $region20: #{tpu_custom_call.1} parent=11 // pred_fallthru
          _
        // Predicated region
        $region21: #{tpu_custom_call.1} parent=11 // pred_check
          %p164 = pneg %p106
        $region22: #{tpu_custom_call.1} parent=11 // pred_check_branch
          %166 = sbr.rel (%p164) target = $region24
        $region23: #{tpu_custom_call.1} parent=11 // pred_region
          _
        $region24: #{tpu_custom_call.1} parent=11 // pred_fallthru
          _
      $region12: #{tpu_custom_call.1} parent=5 // pred_fallthru
        _
      %p167 = scmp.lt.s32.totalorder %s17, 2
      // Predicated region
      $region25: #{tpu_custom_call.1} parent=5 // pred_check
        %p168 = pneg %p167
      $region26: #{tpu_custom_call.1} parent=5 // pred_check_branch
        %170 = sbr.rel (%p168) target = $region28
      $region27: #{tpu_custom_call.1} parent=5 // pred_region
        // Predicated region
        $region29: #{tpu_custom_call.1} parent=27 // pred_check
          %p171 = pneg %p37
        $region30: #{tpu_custom_call.1} parent=27 // pred_check_branch
          %173 = sbr.rel (%p171) target = $region32
        $region31: #{tpu_custom_call.1} parent=27 // pred_region
          %s174 = sand.u32 %s27, 1
          %s175 = scalar_lea.sflag [#allocation3], %s174
          %s176 = sand.u32 %s27, 1
          %s177 = smul.addr %s176, 24
          %s178 = scalar_lea.vmem [#allocation2], %s177
          %180 = vsyncadd %s175, 0
          %s181 = smul.addr %s17, 6
          %s182 = smul.addr %s181, 4
          %s183 = scalar_lea.hbm %s0, %s182
          %s185 = sshll.u32 %s183, 4
          %s186 = int_to_ptr.hbm [resolvable:$true] %s185
          %s187 = sshll.u32 %s178, 4
          %s188 = int_to_ptr.vmem [resolvable:$true] %s187
          %190 = dma.hbm_to_vmem [thread:$0]  %s186, 384, %s188, %s175
        $region32: #{tpu_custom_call.1} parent=27 // pred_fallthru
          _
      $region28: #{tpu_custom_call.1} parent=5 // pred_fallthru
        _
      %p191 = scmp.le.s32.totalorder 1, %s17
      %p192 = scmp.lt.s32.totalorder %s17, 3
      %p193 = pnand %p191, %p192
      %p194 = pneg %p193
      // Predicated region
      $region33: #{tpu_custom_call.1} parent=5 // pred_check
        _
      $region34: #{tpu_custom_call.1} parent=5 // pred_check_branch
        %196 = sbr.rel (%p193) target = $region36
      $region35: #{tpu_custom_call.1} parent=5 // pred_region
        %s197 = ssub.s32 %s17, 1
        %s198 = sand.u32 %s30, 1
        %s199 = scalar_lea.sflag [#allocation3], %s198
        %s200 = sand.u32 %s30, 1
        %s201 = smul.addr %s200, 24
        %s202 = scalar_lea.vmem [#allocation2], %s201
        // Predicated region
        $region37: #{tpu_custom_call.1} parent=35 // pred_check
          %p203 = pneg %p43
        $region38: #{tpu_custom_call.1} parent=35 // pred_check_branch
          %205 = sbr.rel (%p203) target = $region40
        $region39: #{tpu_custom_call.1} parent=35 // pred_region
          %207 = dma.done %s199, 384
        $region40: #{tpu_custom_call.1} parent=35 // pred_fallthru
          _
        // Predicated region
        $region41: #{tpu_custom_call.1} parent=35 // pred_check
          %p208 = pneg %p64
        $region42: #{tpu_custom_call.1} parent=35 // pred_check_branch
          %210 = sbr.rel (%p208) target = $region44
        $region43: #{tpu_custom_call.1} parent=35 // pred_region
          %212 = dma.done [#allocation6], 6144
        $region44: #{tpu_custom_call.1} parent=35 // pred_fallthru
          _
        %s213 = sand.u32 %s30, 1
        %s214 = scalar_lea.sflag [#allocation3], %s213
        %s215 = sand.u32 %s30, 1
        %s216 = smul.addr %s215, 24
        %s217 = scalar_lea.vmem [#allocation2], %s216
        %p218 = pneg %p43
        %p219 = pneg %p40
        %p220 = pneg %p64
        %p221 = pneg %p61
        %p222 = pneg %p85
        %p223 = pneg %p82
        %p224 = pneg %p106
        %p225 = pneg %p103
        %p226 = pneg %p132
        %p227 = pneg %p129
        %s228 = sand.u32 %s119, 1
        %s229 = scalar_lea.sflag [#allocation4], %s228
        %s230 = sand.u32 %s119, 1
        %s231 = smul.addr %s230, 4
        %s232 = scalar_lea.vmem [#allocation7], %s231
        %v233 = vld [vmem:[#allocation5] sm:$0xf]
        %v234 = vld [vmem:[#allocation5 + $0x4] sm:$0xf]
        %v235 = vld [vmem:[#allocation5 + $0x8] sm:$0xf]
        %v236 = vld [vmem:[#allocation5 + $0xc] sm:$0xf]
        %v237 = vld [vmem:[#allocation5 + $0x10] sm:$0xf]
        %v238 = vld [vmem:[#allocation5 + $0x14] sm:$0xf]
        %v239 = vld [vmem:[#allocation5 + $0x18] sm:$0xf]
        %v240 = vld [vmem:[#allocation5 + $0x1c] sm:$0xf]
        %v241 = vld [vmem:[#allocation5 + $0x20] sm:$0xf]
        %v242 = vld [vmem:[#allocation5 + $0x24] sm:$0xf]
        %v243 = vld [vmem:[#allocation5 + $0x28] sm:$0xf]
        %v244 = vld [vmem:[#allocation5 + $0x2c] sm:$0xf]
        %v245 = vld [vmem:[#allocation5 + $0x30] sm:$0xf]
        %v246 = vld [vmem:[#allocation5 + $0x34] sm:$0xf]
        %v247 = vld [vmem:[#allocation5 + $0x38] sm:$0xf]
        %v248 = vld [vmem:[#allocation5 + $0x3c] sm:$0xf]
        %v249 = vld [vmem:[#allocation5 + $0x40] sm:$0xf]
        %v250 = vld [vmem:[#allocation5 + $0x44] sm:$0xf]
        %v251 = vld [vmem:[#allocation5 + $0x48] sm:$0xf]
        %v252 = vld [vmem:[#allocation5 + $0x4c] sm:$0xf]
        %v253 = vld [vmem:[#allocation5 + $0x50] sm:$0xf]
        %v254 = vld [vmem:[#allocation5 + $0x54] sm:$0xf]
        %v255 = vld [vmem:[#allocation5 + $0x58] sm:$0xf]
        %v256 = vld [vmem:[#allocation5 + $0x5c] sm:$0xf]
        %v257 = vld [vmem:[#allocation5 + $0x60] sm:$0xf]
        %v258 = vld [vmem:[#allocation5 + $0x64] sm:$0xf]
        %v259 = vld [vmem:[#allocation5 + $0x68] sm:$0xf]
        %v260 = vld [vmem:[#allocation5 + $0x6c] sm:$0xf]
        %v261 = vld [vmem:[#allocation5 + $0x70] sm:$0xf]
        %v262 = vld [vmem:[#allocation5 + $0x74] sm:$0xf]
        %v263 = vld [vmem:[#allocation5 + $0x78] sm:$0xf]
        %v264 = vld [vmem:[#allocation5 + $0x7c] sm:$0xf]
        %v265 = vld [vmem:[#allocation5 + $0x80] sm:$0xf]
        %v266 = vld [vmem:[#allocation5 + $0x84] sm:$0xf]
        %v267 = vld [vmem:[#allocation5 + $0x88] sm:$0xf]
        %v268 = vld [vmem:[#allocation5 + $0x8c] sm:$0xf]
        %v269 = vld [vmem:[#allocation5 + $0x90] sm:$0xf]
        %v270 = vld [vmem:[#allocation5 + $0x94] sm:$0xf]
        %v271 = vld [vmem:[#allocation5 + $0x98] sm:$0xf]
        %v272 = vld [vmem:[#allocation5 + $0x9c] sm:$0xf]
        %v273 = vld [vmem:[#allocation5 + $0xa0] sm:$0xf]
        %v274 = vld [vmem:[#allocation5 + $0xa4] sm:$0xf]
        %v275 = vld [vmem:[#allocation5 + $0xa8] sm:$0xf]
        %v276 = vld [vmem:[#allocation5 + $0xac] sm:$0xf]
        %v277 = vld [vmem:[#allocation5 + $0xb0] sm:$0xf]
        %v278 = vld [vmem:[#allocation5 + $0xb4] sm:$0xf]
        %v279 = vld [vmem:[#allocation5 + $0xb8] sm:$0xf]
        %v280 = vld [vmem:[#allocation5 + $0xbc] sm:$0xf]
        %v281 = vld [vmem:[#allocation5 + $0xc0] sm:$0xf]
        %v282 = vld [vmem:[#allocation5 + $0xc4] sm:$0xf]
        %v283 = vld [vmem:[#allocation5 + $0xc8] sm:$0xf]
        %v284 = vld [vmem:[#allocation5 + $0xcc] sm:$0xf]
        %v285 = vld [vmem:[#allocation5 + $0xd0] sm:$0xf]
        %v286 = vld [vmem:[#allocation5 + $0xd4] sm:$0xf]
        %v287 = vld [vmem:[#allocation5 + $0xd8] sm:$0xf]
        %v288 = vld [vmem:[#allocation5 + $0xdc] sm:$0xf]
        %v289 = vld [vmem:[#allocation5 + $0xe0] sm:$0xf]
        %v290 = vld [vmem:[#allocation5 + $0xe4] sm:$0xf]
        %v291 = vld [vmem:[#allocation5 + $0xe8] sm:$0xf]
        %v292 = vld [vmem:[#allocation5 + $0xec] sm:$0xf]
        %v293 = vld [vmem:[#allocation5 + $0xf0] sm:$0xf]
        %v294 = vld [vmem:[#allocation5 + $0xf4] sm:$0xf]
        %v295 = vld [vmem:[#allocation5 + $0xf8] sm:$0xf]
        %v296 = vld [vmem:[#allocation5 + $0xfc] sm:$0xf]
        %v297 = vld [vmem:[#allocation5 + $0x100] sm:$0xf]
        %v298 = vld [vmem:[#allocation5 + $0x104] sm:$0xf]
        %v299 = vld [vmem:[#allocation5 + $0x108] sm:$0xf]
        %v300 = vld [vmem:[#allocation5 + $0x10c] sm:$0xf]
        %v301 = vld [vmem:[#allocation5 + $0x110] sm:$0xf]
        %v302 = vld [vmem:[#allocation5 + $0x114] sm:$0xf]
        %v303 = vld [vmem:[#allocation5 + $0x118] sm:$0xf]
        %v304 = vld [vmem:[#allocation5 + $0x11c] sm:$0xf]
        %v305 = vld [vmem:[#allocation5 + $0x120] sm:$0xf]
        %v306 = vld [vmem:[#allocation5 + $0x124] sm:$0xf]
        %v307 = vld [vmem:[#allocation5 + $0x128] sm:$0xf]
        %v308 = vld [vmem:[#allocation5 + $0x12c] sm:$0xf]
        %v309 = vld [vmem:[#allocation5 + $0x130] sm:$0xf]
        %v310 = vld [vmem:[#allocation5 + $0x134] sm:$0xf]
        %v311 = vld [vmem:[#allocation5 + $0x138] sm:$0xf]
        %v312 = vld [vmem:[#allocation5 + $0x13c] sm:$0xf]
        %v313 = vld [vmem:[#allocation5 + $0x140] sm:$0xf]
        %v314 = vld [vmem:[#allocation5 + $0x144] sm:$0xf]
        %v315 = vld [vmem:[#allocation5 + $0x148] sm:$0xf]
        %v316 = vld [vmem:[#allocation5 + $0x14c] sm:$0xf]
        %v317 = vld [vmem:[#allocation5 + $0x150] sm:$0xf]
        %v318 = vld [vmem:[#allocation5 + $0x154] sm:$0xf]
        %v319 = vld [vmem:[#allocation5 + $0x158] sm:$0xf]
        %v320 = vld [vmem:[#allocation5 + $0x15c] sm:$0xf]
        %v321 = vld [vmem:[#allocation5 + $0x160] sm:$0xf]
        %v322 = vld [vmem:[#allocation5 + $0x164] sm:$0xf]
        %v323 = vld [vmem:[#allocation5 + $0x168] sm:$0xf]
        %v324 = vld [vmem:[#allocation5 + $0x16c] sm:$0xf]
        %v325 = vld [vmem:[#allocation5 + $0x170] sm:$0xf]
        %v326 = vld [vmem:[#allocation5 + $0x174] sm:$0xf]
        %v327 = vld [vmem:[#allocation5 + $0x178] sm:$0xf]
        %v328 = vld [vmem:[#allocation5 + $0x17c] sm:$0xf]
        %v329 = vld [vmem:[%s2] sm:$0x1]
        %v330 = vlaneseq
        %v331 = vshrl.u32 %v330, 7
        %v332 = vadd.s32 %v331, 1
        %v333 = vcvt.s32.f32 %v332
        %v334 = vld [vmem:[%s202] sm:$0xff]
        %v335 = vld [vmem:[%s202 + $0x8] sm:$0xff]
        %v336 = vld [vmem:[%s202 + $0x10] sm:$0xff]
        %340 = vst [vmem:[#allocation1] ss:$2 sm:$0xff] %v334
        %s341 = scalar_lea.vmem [#allocation1], 16
        %342 = vst [vmem:[%s341] ss:$2 sm:$0xff] %v335
        %s343 = scalar_lea.vmem [#allocation1], 32
        %344 = vst [vmem:[%s343] ss:$2 sm:$0xff] %v336
        %v345 = vld.sshfl [vmem:[#allocation1] sm:$0xff pattern:$0x75316420]
        %v346 = vld.sshfl [vmem:[#allocation1 + $0x8] sm:$0xff pattern:$0x75316420]
        %v347 = vld.sshfl [vmem:[#allocation1 + $0x10] sm:$0xff pattern:$0x75316420]
        %v348 = vld.sshfl [vmem:[#allocation1 + $0x18] sm:$0xff pattern:$0x75316420]
        %v349 = vld.sshfl [vmem:[#allocation1 + $0x20] sm:$0xff pattern:$0x75316420]
        %v350 = vld.sshfl [vmem:[#allocation1 + $0x28] sm:$0xff pattern:$0x75316420]
        %v357 = vpack.c.bf16 %v345, %v345
        %v358 = vpack.c.bf16 %v346, %v346
        %v359 = vpack.c.bf16 %v347, %v347
        %v360 = vpack.c.bf16 %v348, %v348
        %v361 = vpack.c.bf16 %v349, %v349
        %v362 = vpack.c.bf16 %v350, %v350
        %v364 = vperm.slane %v329, 0
        %v462 = vunpack.c.l.b16 %v233
        %v463 = vunpack.c.l.b16 %v234
        %v464 = vunpack.c.l.b16 %v235
        %v465 = vunpack.c.l.b16 %v236
        %v466 = vunpack.c.l.b16 %v237
        %v467 = vunpack.c.l.b16 %v238
        %v468 = vunpack.c.l.b16 %v239
        %v469 = vunpack.c.l.b16 %v240
        %v470 = vunpack.c.l.b16 %v241
        %v471 = vunpack.c.l.b16 %v242
        %v472 = vunpack.c.l.b16 %v243
        %v473 = vunpack.c.l.b16 %v244
        %v474 = vunpack.c.l.b16 %v245
        %v475 = vunpack.c.l.b16 %v246
        %v476 = vunpack.c.l.b16 %v247
        %v477 = vunpack.c.l.b16 %v248
        %v478 = vunpack.c.l.b16 %v249
        %v479 = vunpack.c.l.b16 %v250
        %v480 = vunpack.c.l.b16 %v251
        %v481 = vunpack.c.l.b16 %v252
        %v482 = vunpack.c.l.b16 %v253
        %v483 = vunpack.c.l.b16 %v254
        %v484 = vunpack.c.l.b16 %v255
        %v485 = vunpack.c.l.b16 %v256
        %v486 = vunpack.c.l.b16 %v257
        %v487 = vunpack.c.l.b16 %v258
        %v488 = vunpack.c.l.b16 %v259
        %v489 = vunpack.c.l.b16 %v260
        %v490 = vunpack.c.l.b16 %v261
        %v491 = vunpack.c.l.b16 %v262
        %v492 = vunpack.c.l.b16 %v263
        %v493 = vunpack.c.l.b16 %v264
        %v494 = vunpack.c.l.b16 %v265
        %v495 = vunpack.c.l.b16 %v266
        %v496 = vunpack.c.l.b16 %v267
        %v497 = vunpack.c.l.b16 %v268
        %v498 = vunpack.c.l.b16 %v269
        %v499 = vunpack.c.l.b16 %v270
        %v500 = vunpack.c.l.b16 %v271
        %v501 = vunpack.c.l.b16 %v272
        %v502 = vunpack.c.l.b16 %v273
        %v503 = vunpack.c.l.b16 %v274
        %v504 = vunpack.c.l.b16 %v275
        %v505 = vunpack.c.l.b16 %v276
        %v506 = vunpack.c.l.b16 %v277
        %v507 = vunpack.c.l.b16 %v278
        %v508 = vunpack.c.l.b16 %v279
        %v509 = vunpack.c.l.b16 %v280
        %v510 = vunpack.c.l.b16 %v281
        %v511 = vunpack.c.l.b16 %v282
        %v512 = vunpack.c.l.b16 %v283
        %v513 = vunpack.c.l.b16 %v284
        %v514 = vunpack.c.l.b16 %v285
        %v515 = vunpack.c.l.b16 %v286
        %v516 = vunpack.c.l.b16 %v287
        %v517 = vunpack.c.l.b16 %v288
        %v518 = vunpack.c.l.b16 %v289
        %v519 = vunpack.c.l.b16 %v290
        %v520 = vunpack.c.l.b16 %v291
        %v521 = vunpack.c.l.b16 %v292
        %v522 = vunpack.c.l.b16 %v293
        %v523 = vunpack.c.l.b16 %v294
        %v524 = vunpack.c.l.b16 %v295
        %v525 = vunpack.c.l.b16 %v296
        %v526 = vunpack.c.l.b16 %v297
        %v527 = vunpack.c.l.b16 %v298
        %v528 = vunpack.c.l.b16 %v299
        %v529 = vunpack.c.l.b16 %v300
        %v530 = vunpack.c.l.b16 %v301
        %v531 = vunpack.c.l.b16 %v302
        %v532 = vunpack.c.l.b16 %v303
        %v533 = vunpack.c.l.b16 %v304
        %v534 = vunpack.c.l.b16 %v305
        %v535 = vunpack.c.l.b16 %v306
        %v536 = vunpack.c.l.b16 %v307
        %v537 = vunpack.c.l.b16 %v308
        %v538 = vunpack.c.l.b16 %v309
        %v539 = vunpack.c.l.b16 %v310
        %v540 = vunpack.c.l.b16 %v311
        %v541 = vunpack.c.l.b16 %v312
        %v542 = vunpack.c.l.b16 %v313
        %v543 = vunpack.c.l.b16 %v314
        %v544 = vunpack.c.l.b16 %v315
        %v545 = vunpack.c.l.b16 %v316
        %v546 = vunpack.c.l.b16 %v317
        %v547 = vunpack.c.l.b16 %v318
        %v548 = vunpack.c.l.b16 %v319
        %v549 = vunpack.c.l.b16 %v320
        %v550 = vunpack.c.l.b16 %v321
        %v551 = vunpack.c.l.b16 %v322
        %v552 = vunpack.c.l.b16 %v323
        %v553 = vunpack.c.l.b16 %v324
        %v554 = vunpack.c.l.b16 %v325
        %v555 = vunpack.c.l.b16 %v326
        %v556 = vunpack.c.l.b16 %v327
        %v557 = vunpack.c.l.b16 %v328
        %v558 = vpack.c.b16 %v463, %v462
        %v559 = vpack.c.b16 %v465, %v464
        %v560 = vpack.c.b16 %v467, %v466
        %v561 = vpack.c.b16 %v469, %v468
        %v562 = vpack.c.b16 %v471, %v470
        %v563 = vpack.c.b16 %v473, %v472
        %v564 = vpack.c.b16 %v475, %v474
        %v565 = vpack.c.b16 %v477, %v476
        %v566 = vpack.c.b16 %v479, %v478
        %v567 = vpack.c.b16 %v481, %v480
        %v568 = vpack.c.b16 %v483, %v482
        %v569 = vpack.c.b16 %v485, %v484
        %v570 = vpack.c.b16 %v487, %v486
        %v571 = vpack.c.b16 %v489, %v488
        %v572 = vpack.c.b16 %v491, %v490
        %v573 = vpack.c.b16 %v493, %v492
        %v574 = vpack.c.b16 %v495, %v494
        %v575 = vpack.c.b16 %v497, %v496
        %v576 = vpack.c.b16 %v499, %v498
        %v577 = vpack.c.b16 %v501, %v500
        %v578 = vpack.c.b16 %v503, %v502
        %v579 = vpack.c.b16 %v505, %v504
        %v580 = vpack.c.b16 %v507, %v506
        %v581 = vpack.c.b16 %v509, %v508
        %v582 = vpack.c.b16 %v511, %v510
        %v583 = vpack.c.b16 %v513, %v512
        %v584 = vpack.c.b16 %v515, %v514
        %v585 = vpack.c.b16 %v517, %v516
        %v586 = vpack.c.b16 %v519, %v518
        %v587 = vpack.c.b16 %v521, %v520
        %v588 = vpack.c.b16 %v523, %v522
        %v589 = vpack.c.b16 %v525, %v524
        %v590 = vpack.c.b16 %v527, %v526
        %v591 = vpack.c.b16 %v529, %v528
        %v592 = vpack.c.b16 %v531, %v530
        %v593 = vpack.c.b16 %v533, %v532
        %v594 = vpack.c.b16 %v535, %v534
        %v595 = vpack.c.b16 %v537, %v536
        %v596 = vpack.c.b16 %v539, %v538
        %v597 = vpack.c.b16 %v541, %v540
        %v598 = vpack.c.b16 %v543, %v542
        %v599 = vpack.c.b16 %v545, %v544
        %v600 = vpack.c.b16 %v547, %v546
        %v601 = vpack.c.b16 %v549, %v548
        %v602 = vpack.c.b16 %v551, %v550
        %v603 = vpack.c.b16 %v553, %v552
        %v604 = vpack.c.b16 %v555, %v554
        %v605 = vpack.c.b16 %v557, %v556
        %654 = vmatpush.bf16.msra.mxu0 %v565
        %655 = vmatpush.bf16.msra.mxu0 %v564
        %656 = vmatpush.bf16.msra.mxu0 %v563
        %657 = vmatpush.bf16.msra.mxu0 %v562
        %658 = vmatpush.bf16.msra.mxu0 %v561
        %659 = vmatpush.bf16.msra.mxu0 %v560
        %660 = vmatpush.bf16.msra.mxu0 %v559
        %661 = vmatpush.bf16.msra.mxu0 %v558
        %662 = vmatmul.bf16.gmra.mxu0 %v357
        %v663 = vpop.f32.mrf.mxu0
        %v664 = vadd.f32 %v364, %v663
        %v665 = vpop.f32.mrf.mxu0
        %666 = vdwg.mxu0
        %667 = vmatpush.bf16.msra.mxu0 %v573
        %668 = vmatpush.bf16.msra.mxu0 %v572
        %669 = vmatpush.bf16.msra.mxu0 %v571
        %670 = vmatpush.bf16.msra.mxu0 %v570
        %671 = vmatpush.bf16.msra.mxu0 %v569
        %672 = vmatpush.bf16.msra.mxu0 %v568
        %673 = vmatpush.bf16.msra.mxu0 %v567
        %674 = vmatpush.bf16.msra.mxu0 %v566
        %675 = vmatmul.bf16.gmra.mxu0 %v358
        %v676 = vpop.f32.mrf.mxu0
        %v677 = vadd.f32 %v664, %v676
        %v678 = vpop.f32.mrf.mxu0
        %679 = vdwg.mxu0
        %680 = vmatpush.bf16.msra.mxu0 %v581
        %681 = vmatpush.bf16.msra.mxu0 %v580
        %682 = vmatpush.bf16.msra.mxu0 %v579
        %683 = vmatpush.bf16.msra.mxu0 %v578
        %684 = vmatpush.bf16.msra.mxu0 %v577
        %685 = vmatpush.bf16.msra.mxu0 %v576
        %686 = vmatpush.bf16.msra.mxu0 %v575
        %687 = vmatpush.bf16.msra.mxu0 %v574
        %688 = vmatmul.bf16.gmra.mxu0 %v359
        %v689 = vpop.f32.mrf.mxu0
        %v690 = vadd.f32 %v677, %v689
        %v691 = vpop.f32.mrf.mxu0
        %692 = vdwg.mxu0
        %693 = vmatpush.bf16.msra.mxu0 %v589
        %694 = vmatpush.bf16.msra.mxu0 %v588
        %695 = vmatpush.bf16.msra.mxu0 %v587
        %696 = vmatpush.bf16.msra.mxu0 %v586
        %697 = vmatpush.bf16.msra.mxu0 %v585
        %698 = vmatpush.bf16.msra.mxu0 %v584
        %699 = vmatpush.bf16.msra.mxu0 %v583
        %700 = vmatpush.bf16.msra.mxu0 %v582
        %701 = vmatmul.bf16.gmra.mxu0 %v360
        %v702 = vpop.f32.mrf.mxu0
        %v703 = vadd.f32 %v690, %v702
        %v704 = vpop.f32.mrf.mxu0
        %705 = vdwg.mxu0
        %706 = vmatpush.bf16.msra.mxu0 %v597
        %707 = vmatpush.bf16.msra.mxu0 %v596
        %708 = vmatpush.bf16.msra.mxu0 %v595
        %709 = vmatpush.bf16.msra.mxu0 %v594
        %710 = vmatpush.bf16.msra.mxu0 %v593
        %711 = vmatpush.bf16.msra.mxu0 %v592
        %712 = vmatpush.bf16.msra.mxu0 %v591
        %713 = vmatpush.bf16.msra.mxu0 %v590
        %714 = vmatmul.bf16.gmra.mxu0 %v361
        %v715 = vpop.f32.mrf.mxu0
        %v716 = vadd.f32 %v703, %v715
        %v717 = vpop.f32.mrf.mxu0
        %718 = vdwg.mxu0
        %719 = vmatpush.bf16.msra.mxu0 %v605
        %720 = vmatpush.bf16.msra.mxu0 %v604
        %721 = vmatpush.bf16.msra.mxu0 %v603
        %722 = vmatpush.bf16.msra.mxu0 %v602
        %723 = vmatpush.bf16.msra.mxu0 %v601
        %724 = vmatpush.bf16.msra.mxu0 %v600
        %725 = vmatpush.bf16.msra.mxu0 %v599
        %726 = vmatpush.bf16.msra.mxu0 %v598
        %727 = vmatmul.bf16.gmra.mxu0 %v362
        %v728 = vpop.f32.mrf.mxu0
        %v729 = vadd.f32 %v716, %v728
        %v730 = vpop.f32.mrf.mxu0
        %731 = vdwg.mxu0
        %v732 = vadd.f32 %v729, %v333
        %733 = vst [vmem:[%s232] sm:$0xf] %v732
        %s734 = sand.u32 %s119, 1
        %s735 = scalar_lea.sflag [#allocation4], %s734
        %s736 = sand.u32 %s119, 1
        %s737 = smul.addr %s736, 4
        %s738 = scalar_lea.vmem [#allocation7], %s737
        // Predicated region
        $region45: #{tpu_custom_call.1} parent=35 // pred_check
          %p739 = pneg %p129
        $region46: #{tpu_custom_call.1} parent=35 // pred_check_branch
          %741 = sbr.rel (%p739) target = $region48
        $region47: #{tpu_custom_call.1} parent=35 // pred_region
          %743 = vsyncadd %s735, 0
          %s744 = smul.addr %s22, 4
          %s745 = scalar_lea.hbm %s4, %s744
          %s747 = sshll.u32 %s738, 4
          %s748 = int_to_ptr.vmem [resolvable:$true] %s747
          %s749 = sshll.u32 %s745, 4
          %s750 = int_to_ptr.hbm [resolvable:$true] %s749
          %752 = dma.vmem_to_hbm [thread:$0]  %s748, 64, %s750, %s735
        $region48: #{tpu_custom_call.1} parent=35 // pred_fallthru
          _
      $region36: #{tpu_custom_call.1} parent=5 // pred_fallthru
        _
      %p753 = scmp.le.s32.totalorder 2, %s17
      // Predicated region
      $region49: #{tpu_custom_call.1} parent=5 // pred_check
        %p754 = pneg %p753
      $region50: #{tpu_custom_call.1} parent=5 // pred_check_branch
        %756 = sbr.rel (%p754) target = $region52
      $region51: #{tpu_custom_call.1} parent=5 // pred_region
        %s757 = ssub.s32 %s17, 2
        // Predicated region
        $region53: #{tpu_custom_call.1} parent=51 // pred_check
          %p758 = pneg %p135
        $region54: #{tpu_custom_call.1} parent=51 // pred_check_branch
          %760 = sbr.rel (%p758) target = $region56
        $region55: #{tpu_custom_call.1} parent=51 // pred_region
          %s761 = sand.u32 %s120, 1
          %s762 = scalar_lea.sflag [#allocation4], %s761
          %s763 = sand.u32 %s120, 1
          %s764 = smul.addr %s763, 4
          %s765 = scalar_lea.vmem [#allocation7], %s764
          %767 = dma.done %s762, 64
        $region56: #{tpu_custom_call.1} parent=51 // pred_fallthru
          _
      $region52: #{tpu_custom_call.1} parent=5 // pred_fallthru
        _
    $region6: #{tpu_custom_call.1} parent=1 // loop_footer
      %s21 = sadd.s32 1, %s17
    $region7: #{tpu_custom_call.1} parent=1 // loop_footer_branch
      %16 = sbr.rel target = $region3
    $region8: #{tpu_custom_call.1} parent=1 // loop_exit
      _
    %768 = vsyncpa [#allocation3], 1
    %s769 = scalar_lea.sflag [#allocation3], 1
    %770 = vsyncpa %s769, 1
    %771 = vsyncpa [#allocation6], 1
    %772 = vsyncpa [#allocation4], 1
    %s773 = scalar_lea.sflag [#allocation4], 1
    %774 = vsyncpa %s773, 1

</llo_original>
